<compile_context>
chip_gen: v7x
topology: tpu7x:2x2x1
jax: 0.10.0
libtpu: 0.0.40
codegen_flags: <defaults>
</compile_context>

<pallas_src>
import math
from functools import partial

import numpy as np
import jax
import jax.numpy as jnp
from jax.experimental import pallas as pl
from jax.experimental.pallas import tpu as pltpu

# ----------------------------- config ---------------------------------------
VOCAB_SIZE = 64
BLOCK_SIZE = 16       # max sequence length
N_EMBD = 32
N_HEAD = 4
N_LAYER = 2
DROPOUT = 0.0         # eval-mode / 0.0 -> dropout is identity
LN_EPS = 1e-5         # torch.nn.LayerNorm default


# ----------------------------- kernel ----------------------------------------
def _layernorm(x, w, b):
    mu = jnp.mean(x, axis=-1, keepdims=True)
    var = jnp.mean((x - mu) ** 2, axis=-1, keepdims=True)
    return (x - mu) * jax.lax.rsqrt(var + LN_EPS) * w + b


def fused_encoder_kernel(idx_ref, hmask_ref, wte_ref, wpe_ref,
                         ln1w_ref, ln1b_ref,
                         wq_ref, bq_ref, wk_ref, bk_ref, wv_ref, bv_ref,
                         wproj_ref, bproj_ref,
                         ln2w_ref, ln2b_ref,
                         wfc_ref, bfc_ref, wfp_ref, bfp_ref,
                         lnfw_ref, lnfb_ref,
                         out_ref, att_ref, *, n_layer, n_head, batch, seq):
    C = wte_ref.shape[-1]
    vocab = wte_ref.shape[0]
    dh = C // n_head
    bt = batch * seq
    scale = 1.0 / math.sqrt(dh)
    bf16 = jnp.bfloat16

    # ---- fused token + position embedding (dropout = identity, eval) --------
    ids = idx_ref[...]                                             # (BT, 1) int32
    tok_onehot = (jax.lax.broadcasted_iota(jnp.int32, (bt, vocab), 1)
                  == ids).astype(jnp.float32)                      # (BT, V)
    tok = jnp.dot(tok_onehot, wte_ref[...],
                  preferred_element_type=jnp.float32)              # exact gather
    pos = jnp.concatenate([wpe_ref[0:seq, :]] * batch, axis=0)     # (BT, C)
    x = tok + pos                                                  # (BT, C) f32

    # head-block mask: row (h, t) keeps only channels of head h    (H*T, C)
    head_mask = hmask_ref[...]

    for l in range(n_layer):                                       # static unroll
        # ---- self-attention sublayer ------------------------------------
        h1 = _layernorm(x, ln1w_ref[l], ln1b_ref[l])
        h1b = h1.astype(bf16)
        q = jnp.dot(h1b, wq_ref[l], preferred_element_type=jnp.float32) + bq_ref[l]
        k = jnp.dot(h1b, wk_ref[l], preferred_element_type=jnp.float32) + bk_ref[l]
        v = jnp.dot(h1b, wv_ref[l], preferred_element_type=jnp.float32) + bv_ref[l]
        q3 = q.reshape(batch, seq, C)
        k3 = k.reshape(batch, seq, C)
        v3 = v.reshape(batch, seq, C)

        # expand queries to rows (h, t) and mask to that head's channel block
        qexp = jnp.concatenate([q3] * n_head, axis=1) * head_mask  # (B, H*T, C)

        # per-head scores in one batched einsum: rows already (h, t) ordered
        s = jnp.einsum("brc,bkc->brk", qexp.astype(bf16), k3.astype(bf16),
                       preferred_element_type=jnp.float32) * scale  # (B, H*T, T)

        # single softmax stream over all (b, h, t) rows, f32 math
        s = s - jnp.max(s, axis=-1, keepdims=True)
        p = jnp.exp(s)
        att = p * pl.reciprocal(jnp.sum(p, axis=-1, keepdims=True), approx=True)

        # one store per layer, already in (h, t, t') order (wrapper only reshapes)
        att_ref[l] = att                                            # (B, H*T, T)

        # att @ v for all heads at once, then fold the per-head rows back to (t)
        z = jnp.einsum("brk,bkc->brc", att.astype(bf16), v3.astype(bf16),
                       preferred_element_type=jnp.float32)          # (B, H*T, C)
        z = z * head_mask
        y3 = z[:, 0:seq, :]
        for hh in range(1, n_head):                                 # static, H-1 adds
            y3 = y3 + z[:, hh * seq:(hh + 1) * seq, :]              # (B, T, C)
        y = y3.reshape(bt, C)
        y = jnp.dot(y.astype(bf16), wproj_ref[l],
                    preferred_element_type=jnp.float32) + bproj_ref[l]
        x = x + y                                                   # residual

        # ---- MLP sublayer -------------------------------------------------
        h2 = _layernorm(x, ln2w_ref[l], ln2b_ref[l])
        m = jnp.dot(h2.astype(bf16), wfc_ref[l],
                    preferred_element_type=jnp.float32) + bfc_ref[l]
        # TODO(synk): nanoGPT "new GELU" (tanh); PyTorch nn.GELU() default is erf.
        m = jax.nn.gelu(m, approximate=True)
        m = jnp.dot(m.astype(bf16), wfp_ref[l],
                    preferred_element_type=jnp.float32) + bfp_ref[l]
        x = x + m                                                   # residual

    out_ref[...] = _layernorm(x, lnfw_ref[...], lnfb_ref[...])


# ----------------------------- wrapper ----------------------------------------
@partial(jax.jit, static_argnames=("n_head",))
def encoder_forward(idx, params, n_head=N_HEAD):
    B, T = idx.shape
    assert T <= BLOCK_SIZE
    C = params["wte"].shape[-1]
    L = params["w_q"].shape[0]
    dh = C // n_head

    # trace-time constant (numpy): head-block mask, (H*T, C)
    head_mask = jnp.asarray(
        (np.arange(n_head * T)[:, None] // T) == (np.arange(C)[None, :] // dh),
        dtype=jnp.float32)

    inputs = (idx.reshape(B * T, 1).astype(jnp.int32),
              head_mask,
              params["wte"], params["wpe"],
              params["ln1_w"], params["ln1_b"],
              params["w_q"], params["b_q"],
              params["w_k"], params["b_k"],
              params["w_v"], params["b_v"],
              params["w_proj"], params["b_proj"],
              params["ln2_w"], params["ln2_b"],
              params["w_fc"], params["b_fc"],
              params["w_fc_proj"], params["b_fc_proj"],
              params["ln_f_w"], params["ln_f_b"])

    out_flat, att_flat = pl.pallas_call(
        partial(fused_encoder_kernel, n_layer=L, n_head=n_head, batch=B, seq=T),
        out_shape=(jax.ShapeDtypeStruct((B * T, C), jnp.float32),
                   jax.ShapeDtypeStruct((L, B, n_head * T, T), jnp.float32)),
        in_specs=[pl.BlockSpec(memory_space=pltpu.MemorySpace.VMEM)
                  for _ in inputs],
        out_specs=(pl.BlockSpec(memory_space=pltpu.MemorySpace.VMEM),
                   pl.BlockSpec(memory_space=pltpu.MemorySpace.VMEM)),
    )(*inputs)

    out = out_flat.reshape(B, T, C)
    # stored in (h, t, t') order -> pure reshape, no transpose needed
    att = att_flat.reshape(L, B, n_head, T, T)
    return out, att


# ----------------------------- parameter init ---------------------------------
def init_params(key):
    C, L = N_EMBD, N_LAYER
    std = 0.02
    proj_std = 0.02 / math.sqrt(2 * L)
    f32, bf16 = jnp.float32, jnp.bfloat16
    keys = jax.random.split(key, 8)

    def nrm(k, shape, s):
        return s * jax.random.normal(k, shape, f32)

    return {
        "wte": nrm(keys[0], (VOCAB_SIZE, C), std),
        "wpe": nrm(keys[1], (BLOCK_SIZE, C), std),
        # per-layer weights stacked along (L, ...); QKV pre-split so the kernel
        # never lane-slices; matmul weights in bf16 (MXU operands only)
        "ln1_w": jnp.ones((L, 1, C), f32), "ln1_b": jnp.zeros((L, 1, C), f32),
        "w_q": nrm(keys[2], (L, C, C), std).astype(bf16),
        "b_q": jnp.zeros((L, 1, C), f32),
        "w_k": nrm(keys[3], (L, C, C), std).astype(bf16),
        "b_k": jnp.zeros((L, 1, C), f32),
        "w_v": nrm(keys[4], (L, C, C), std).astype(bf16),
        "b_v": jnp.zeros((L, 1, C), f32),
        "w_proj": nrm(keys[5], (L, C, C), proj_std).astype(bf16),
        "b_proj": jnp.zeros((L, 1, C), f32),
        "ln2_w": jnp.ones((L, 1, C), f32), "ln2_b": jnp.zeros((L, 1, C), f32),
        "w_fc": nrm(keys[6], (L, C, 4 * C), std).astype(bf16),
        "b_fc": jnp.zeros((L, 1, 4 * C), f32),
        "w_fc_proj": nrm(keys[7], (L, 4 * C, C), proj_std).astype(bf16),
        "b_fc_proj": jnp.zeros((L, 1, C), f32),
        "ln_f_w": jnp.ones((1, C), f32), "ln_f_b": jnp.zeros((1, C), f32),
    }


# ----------------------------- main --------------------------------------------
if __name__ == "__main__":
    key = jax.random.PRNGKey(0)
    pkey, dkey = jax.random.split(key)
    params = init_params(pkey)

    B, T = 2, 8
    idx = jax.random.randint(dkey, (B, T), 0, VOCAB_SIZE, dtype=jnp.int32)

    out, att = encoder_forward(idx, params, n_head=N_HEAD)
    out = jax.block_until_ready(out)
    att = jax.block_until_ready(att)
    attn_all = [att[l] for l in range(N_LAYER)]   # per-layer list, as in PyTorch

    assert out.shape == (B, T, N_EMBD)
    assert len(attn_all) == N_LAYER
    assert all(a.shape == (B, N_HEAD, T, T) for a in attn_all)
    # softmax rows sum to ~1 (approx reciprocal -> slightly looser tolerance)
    assert bool(jnp.allclose(jnp.sum(attn_all[0], axis=-1), 1.0, atol=2e-3))
    print("KERNEL_OK")
</pallas_src>

<mosaic_0001>
module attributes {stable_mosaic.version = 11 : i64} {
  func.func @fused_encoder_kernel(%arg0: memref<16x1xi32, #tpu.memory_space<vmem>>, %arg1: memref<32x32xf32, #tpu.memory_space<vmem>>, %arg2: memref<64x32xf32, #tpu.memory_space<vmem>>, %arg3: memref<16x32xf32, #tpu.memory_space<vmem>>, %arg4: memref<2x1x32xf32, #tpu.memory_space<vmem>>, %arg5: memref<2x1x32xf32, #tpu.memory_space<vmem>>, %arg6: memref<2x32x32xbf16, #tpu.memory_space<vmem>>, %arg7: memref<2x1x32xf32, #tpu.memory_space<vmem>>, %arg8: memref<2x32x32xbf16, #tpu.memory_space<vmem>>, %arg9: memref<2x1x32xf32, #tpu.memory_space<vmem>>, %arg10: memref<2x32x32xbf16, #tpu.memory_space<vmem>>, %arg11: memref<2x1x32xf32, #tpu.memory_space<vmem>>, %arg12: memref<2x32x32xbf16, #tpu.memory_space<vmem>>, %arg13: memref<2x1x32xf32, #tpu.memory_space<vmem>>, %arg14: memref<2x1x32xf32, #tpu.memory_space<vmem>>, %arg15: memref<2x1x32xf32, #tpu.memory_space<vmem>>, %arg16: memref<2x32x128xbf16, #tpu.memory_space<vmem>>, %arg17: memref<2x1x128xf32, #tpu.memory_space<vmem>>, %arg18: memref<2x128x32xbf16, #tpu.memory_space<vmem>>, %arg19: memref<2x1x32xf32, #tpu.memory_space<vmem>>, %arg20: memref<1x32xf32, #tpu.memory_space<vmem>>, %arg21: memref<1x32xf32, #tpu.memory_space<vmem>>, %arg22: memref<16x32xf32, #tpu.memory_space<vmem>>, %arg23: memref<2x2x32x8xf32, #tpu.memory_space<vmem>>) attributes {dimension_semantics = [], scalar_prefetch = 0 : i64, scratch_operands = 0 : i64, tpu.core_type = #tpu.core_type<tc>} {
    %c0 = arith.constant 0 : index
    %c0_0 = arith.constant 0 : index
    %0 = vector.load %arg0[%c0, %c0_0] : memref<16x1xi32, #tpu.memory_space<vmem>>, vector<16x1xi32>
    %1 = tpu.iota {dimensions = array<i32: 1>} : vector<16x64xi32>
    %2 = vector.broadcast %0 : vector<16x1xi32> to vector<16x64xi32>
    %3 = arith.cmpi eq, %1, %2 : vector<16x64xi32>
    %4 = arith.extui %3 : vector<16x64xi1> to vector<16x64xi32>
    %5 = arith.sitofp %4 : vector<16x64xi32> to vector<16x64xf32>
    %c0_1 = arith.constant 0 : index
    %c0_2 = arith.constant 0 : index
    %6 = vector.load %arg2[%c0_1, %c0_2] : memref<64x32xf32, #tpu.memory_space<vmem>>, vector<64x32xf32>
    %cst = arith.constant dense<0.000000e+00> : vector<16x32xf32>
    %7 = tpu.matmul %5, %6, %cst {dimension_numbers = #tpu.dot_dimension_numbers<[1], [0], [0], [1], [0, 0, 1, 1], [], []>} : vector<16x64xf32>, vector<64x32xf32>, vector<16x32xf32> -> vector<16x32xf32>
    %c0_3 = arith.constant 0 : index
    %c0_4 = arith.constant 0 : index
    %8 = vector.load %arg3[%c0_3, %c0_4] : memref<16x32xf32, #tpu.memory_space<vmem>>, vector<8x32xf32>
    %9 = tpu.concatenate %8, %8 in 0 : vector<8x32xf32>, vector<8x32xf32> -> vector<16x32xf32>
    %10 = arith.addf %7, %9 : vector<16x32xf32>
    %c0_5 = arith.constant 0 : index
    %c0_6 = arith.constant 0 : index
    %11 = vector.load %arg1[%c0_5, %c0_6] : memref<32x32xf32, #tpu.memory_space<vmem>>, vector<32x32xf32>
    %c0_7 = arith.constant 0 : index
    %c0_8 = arith.constant 0 : index
    %c0_9 = arith.constant 0 : index
    %12 = vector.load %arg4[%c0_7, %c0_8, %c0_9] : memref<2x1x32xf32, #tpu.memory_space<vmem>>, vector<1x1x32xf32>
    %13 = vector.shape_cast %12 : vector<1x1x32xf32> to vector<1x32xf32>
    %c0_10 = arith.constant 0 : index
    %c0_11 = arith.constant 0 : index
    %c0_12 = arith.constant 0 : index
    %14 = vector.load %arg5[%c0_10, %c0_11, %c0_12] : memref<2x1x32xf32, #tpu.memory_space<vmem>>, vector<1x1x32xf32>
    %15 = vector.shape_cast %14 : vector<1x1x32xf32> to vector<1x32xf32>
    %cst_13 = arith.constant dense<0.000000e+00> : vector<16xf32>
    %16 = vector.multi_reduction <add>, %10, %cst_13 [1] : vector<16x32xf32> to vector<16xf32>
    %17 = vector.shape_cast %16 : vector<16xf32> to vector<16x1xf32>
    %cst_14 = arith.constant 3.200000e+01 : f32
    %18 = vector.broadcast %cst_14 : f32 to vector<16x1xf32>
    %19 = arith.divf %17, %18 : vector<16x1xf32>
    %20 = vector.broadcast %19 : vector<16x1xf32> to vector<16x32xf32>
    %21 = arith.subf %10, %20 : vector<16x32xf32>
    %22 = arith.mulf %21, %21 : vector<16x32xf32>
    %cst_15 = arith.constant dense<0.000000e+00> : vector<16xf32>
    %23 = vector.multi_reduction <add>, %22, %cst_15 [1] : vector<16x32xf32> to vector<16xf32>
    %24 = vector.shape_cast %23 : vector<16xf32> to vector<16x1xf32>
    %cst_16 = arith.constant 3.200000e+01 : f32
    %25 = vector.broadcast %cst_16 : f32 to vector<16x1xf32>
    %26 = arith.divf %24, %25 : vector<16x1xf32>
    %27 = vector.broadcast %19 : vector<16x1xf32> to vector<16x32xf32>
    %28 = arith.subf %10, %27 : vector<16x32xf32>
    %cst_17 = arith.constant 9.99999974E-6 : f32
    %29 = vector.broadcast %cst_17 : f32 to vector<16x1xf32>
    %30 = arith.addf %26, %29 : vector<16x1xf32>
    %31 = math.rsqrt %30 : vector<16x1xf32>
    %32 = vector.broadcast %31 : vector<16x1xf32> to vector<16x32xf32>
    %33 = arith.mulf %28, %32 : vector<16x32xf32>
    %34 = vector.broadcast %13 : vector<1x32xf32> to vector<16x32xf32>
    %35 = arith.mulf %33, %34 : vector<16x32xf32>
    %36 = vector.broadcast %15 : vector<1x32xf32> to vector<16x32xf32>
    %37 = arith.addf %35, %36 : vector<16x32xf32>
    %38 = arith.truncf %37 : vector<16x32xf32> to vector<16x32xbf16>
    %c0_18 = arith.constant 0 : index
    %c0_19 = arith.constant 0 : index
    %c0_20 = arith.constant 0 : index
    %39 = vector.load %arg6[%c0_18, %c0_19, %c0_20] : memref<2x32x32xbf16, #tpu.memory_space<vmem>>, vector<1x32x32xbf16>
    %40 = vector.shape_cast %39 : vector<1x32x32xbf16> to vector<32x32xbf16>
    %cst_21 = arith.constant dense<0.000000e+00> : vector<16x32xf32>
    %41 = tpu.matmul %38, %40, %cst_21 {dimension_numbers = #tpu.dot_dimension_numbers<[1], [0], [0], [1], [0, 0, 1, 1], [], []>} : vector<16x32xbf16>, vector<32x32xbf16>, vector<16x32xf32> -> vector<16x32xf32>
    %c0_22 = arith.constant 0 : index
    %c0_23 = arith.constant 0 : index
    %c0_24 = arith.constant 0 : index
    %42 = vector.load %arg7[%c0_22, %c0_23, %c0_24] : memref<2x1x32xf32, #tpu.memory_space<vmem>>, vector<1x1x32xf32>
    %43 = vector.shape_cast %42 : vector<1x1x32xf32> to vector<1x32xf32>
    %44 = vector.broadcast %43 : vector<1x32xf32> to vector<16x32xf32>
    %45 = arith.addf %41, %44 : vector<16x32xf32>
    %c0_25 = arith.constant 0 : index
    %c0_26 = arith.constant 0 : index
    %c0_27 = arith.constant 0 : index
    %46 = vector.load %arg8[%c0_25, %c0_26, %c0_27] : memref<2x32x32xbf16, #tpu.memory_space<vmem>>, vector<1x32x32xbf16>
    %47 = vector.shape_cast %46 : vector<1x32x32xbf16> to vector<32x32xbf16>
    %cst_28 = arith.constant dense<0.000000e+00> : vector<16x32xf32>
    %48 = tpu.matmul %38, %47, %cst_28 {dimension_numbers = #tpu.dot_dimension_numbers<[1], [0], [0], [1], [0, 0, 1, 1], [], []>} : vector<16x32xbf16>, vector<32x32xbf16>, vector<16x32xf32> -> vector<16x32xf32>
    %c0_29 = arith.constant 0 : index
    %c0_30 = arith.constant 0 : index
    %c0_31 = arith.constant 0 : index
    %49 = vector.load %arg9[%c0_29, %c0_30, %c0_31] : memref<2x1x32xf32, #tpu.memory_space<vmem>>, vector<1x1x32xf32>
    %50 = vector.shape_cast %49 : vector<1x1x32xf32> to vector<1x32xf32>
    %51 = vector.broadcast %50 : vector<1x32xf32> to vector<16x32xf32>
    %52 = arith.addf %48, %51 : vector<16x32xf32>
    %c0_32 = arith.constant 0 : index
    %c0_33 = arith.constant 0 : index
    %c0_34 = arith.constant 0 : index
    %53 = vector.load %arg10[%c0_32, %c0_33, %c0_34] : memref<2x32x32xbf16, #tpu.memory_space<vmem>>, vector<1x32x32xbf16>
    %54 = vector.shape_cast %53 : vector<1x32x32xbf16> to vector<32x32xbf16>
    %cst_35 = arith.constant dense<0.000000e+00> : vector<16x32xf32>
    %55 = tpu.matmul %38, %54, %cst_35 {dimension_numbers = #tpu.dot_dimension_numbers<[1], [0], [0], [1], [0, 0, 1, 1], [], []>} : vector<16x32xbf16>, vector<32x32xbf16>, vector<16x32xf32> -> vector<16x32xf32>
    %c0_36 = arith.constant 0 : index
    %c0_37 = arith.constant 0 : index
    %c0_38 = arith.constant 0 : index
    %56 = vector.load %arg11[%c0_36, %c0_37, %c0_38] : memref<2x1x32xf32, #tpu.memory_space<vmem>>, vector<1x1x32xf32>
    %57 = vector.shape_cast %56 : vector<1x1x32xf32> to vector<1x32xf32>
    %58 = vector.broadcast %57 : vector<1x32xf32> to vector<16x32xf32>
    %59 = arith.addf %55, %58 : vector<16x32xf32>
    %60 = vector.shape_cast %45 : vector<16x32xf32> to vector<2x8x32xf32>
    %61 = vector.shape_cast %52 : vector<16x32xf32> to vector<2x8x32xf32>
    %62 = vector.shape_cast %59 : vector<16x32xf32> to vector<2x8x32xf32>
    %63 = tpu.concatenate %60, %60, %60, %60 in 1 : vector<2x8x32xf32>, vector<2x8x32xf32>, vector<2x8x32xf32>, vector<2x8x32xf32> -> vector<2x32x32xf32>
    %64 = vector.shape_cast %11 : vector<32x32xf32> to vector<1x32x32xf32>
    %65 = vector.broadcast %64 : vector<1x32x32xf32> to vector<2x32x32xf32>
    %66 = arith.mulf %63, %65 : vector<2x32x32xf32>
    %67 = arith.truncf %66 : vector<2x32x32xf32> to vector<2x32x32xbf16>
    %68 = arith.truncf %61 : vector<2x8x32xf32> to vector<2x8x32xbf16>
    "tpu.trace_start"() <{level = 10 : i32, message = "brc,bkc->brk"}> : () -> ()
    %cst_39 = arith.constant dense<0.000000e+00> : vector<2x32x8xf32>
    %69 = tpu.matmul %67, %68, %cst_39 {dimension_numbers = #tpu.dot_dimension_numbers<[2], [2], [1], [1], [0, 0, 0, 1, 1, 1], [0], [0]>} : vector<2x32x32xbf16>, vector<2x8x32xbf16>, vector<2x32x8xf32> -> vector<2x32x8xf32>
    "tpu.trace_stop"() : () -> ()
    %cst_40 = arith.constant 0.353553385 : f32
    %70 = vector.broadcast %cst_40 : f32 to vector<2x32x8xf32>
    %71 = arith.mulf %69, %70 : vector<2x32x8xf32>
    %cst_41 = arith.constant dense<0xFF800000> : vector<2x32xf32>
    %72 = vector.multi_reduction <maximumf>, %71, %cst_41 [2] : vector<2x32x8xf32> to vector<2x32xf32>
    %73 = vector.shape_cast %72 : vector<2x32xf32> to vector<2x32x1xf32>
    %74 = vector.broadcast %73 : vector<2x32x1xf32> to vector<2x32x8xf32>
    %75 = arith.subf %71, %74 : vector<2x32x8xf32>
    %76 = math.exp %75 : vector<2x32x8xf32>
    %cst_42 = arith.constant dense<0.000000e+00> : vector<2x32xf32>
    %77 = vector.multi_reduction <add>, %76, %cst_42 [2] : vector<2x32x8xf32> to vector<2x32xf32>
    %78 = vector.shape_cast %77 : vector<2x32xf32> to vector<2x32x1xf32>
    %79 = tpu.reciprocal %78 {approx = true} : vector<2x32x1xf32> -> vector<2x32x1xf32>
    %80 = vector.broadcast %79 : vector<2x32x1xf32> to vector<2x32x8xf32>
    %81 = arith.mulf %76, %80 : vector<2x32x8xf32>
    %c0_43 = arith.constant 0 : index
    %c0_44 = arith.constant 0 : index
    %c0_45 = arith.constant 0 : index
    %c0_46 = arith.constant 0 : index
    %82 = vector.load %arg23[%c0_43, %c0_44, %c0_45, %c0_46] : memref<2x2x32x8xf32, #tpu.memory_space<vmem>>, vector<1x2x32x8xf32>
    %83 = vector.shape_cast %82 : vector<1x2x32x8xf32> to vector<2x32x8xf32>
    %84 = vector.shape_cast %81 : vector<2x32x8xf32> to vector<1x2x32x8xf32>
    tpu.vector_store %arg23[%c0_43, %c0_44, %c0_45, %c0_46], %84 {strides = array<i32>} : memref<2x2x32x8xf32, #tpu.memory_space<vmem>>, vector<1x2x32x8xf32>,
    %85 = arith.truncf %81 : vector<2x32x8xf32> to vector<2x32x8xbf16>
    %86 = arith.truncf %62 : vector<2x8x32xf32> to vector<2x8x32xbf16>
    "tpu.trace_start"() <{level = 10 : i32, message = "brk,bkc->brc"}> : () -> ()
    %cst_47 = arith.constant dense<0.000000e+00> : vector<2x32x32xf32>
    %87 = tpu.matmul %85, %86, %cst_47 {dimension_numbers = #tpu.dot_dimension_numbers<[2], [1], [1], [2], [0, 0, 0, 1, 1, 2], [0], [0]>} : vector<2x32x8xbf16>, vector<2x8x32xbf16>, vector<2x32x32xf32> -> vector<2x32x32xf32>
    "tpu.trace_stop"() : () -> ()
    %88 = vector.shape_cast %11 : vector<32x32xf32> to vector<1x32x32xf32>
    %89 = vector.broadcast %88 : vector<1x32x32xf32> to vector<2x32x32xf32>
    %90 = arith.mulf %87, %89 : vector<2x32x32xf32>
    %91 = vector.extract_strided_slice %90 {offsets = [0, 0, 0], sizes = [2, 8, 32], strides = [1, 1, 1]} : vector<2x32x32xf32> to vector<2x8x32xf32>
    %92 = vector.extract_strided_slice %90 {offsets = [0, 8, 0], sizes = [2, 8, 32], strides = [1, 1, 1]} : vector<2x32x32xf32> to vector<2x8x32xf32>
    %93 = arith.addf %91, %92 : vector<2x8x32xf32>
    %94 = vector.extract_strided_slice %90 {offsets = [0, 16, 0], sizes = [2, 8, 32], strides = [1, 1, 1]} : vector<2x32x32xf32> to vector<2x8x32xf32>
    %95 = arith.addf %93, %94 : vector<2x8x32xf32>
    %96 = vector.extract_strided_slice %90 {offsets = [0, 24, 0], sizes = [2, 8, 32], strides = [1, 1, 1]} : vector<2x32x32xf32> to vector<2x8x32xf32>
    %97 = arith.addf %95, %96 : vector<2x8x32xf32>
    %98 = vector.shape_cast %97 : vector<2x8x32xf32> to vector<16x32xf32>
    %99 = arith.truncf %98 : vector<16x32xf32> to vector<16x32xbf16>
    %c0_48 = arith.constant 0 : index
    %c0_49 = arith.constant 0 : index
    %c0_50 = arith.constant 0 : index
    %100 = vector.load %arg12[%c0_48, %c0_49, %c0_50] : memref<2x32x32xbf16, #tpu.memory_space<vmem>>, vector<1x32x32xbf16>
    %101 = vector.shape_cast %100 : vector<1x32x32xbf16> to vector<32x32xbf16>
    %cst_51 = arith.constant dense<0.000000e+00> : vector<16x32xf32>
    %102 = tpu.matmul %99, %101, %cst_51 {dimension_numbers = #tpu.dot_dimension_numbers<[1], [0], [0], [1], [0, 0, 1, 1], [], []>} : vector<16x32xbf16>, vector<32x32xbf16>, vector<16x32xf32> -> vector<16x32xf32>
    %c0_52 = arith.constant 0 : index
    %c0_53 = arith.constant 0 : index
    %c0_54 = arith.constant 0 : index
    %103 = vector.load %arg13[%c0_52, %c0_53, %c0_54] : memref<2x1x32xf32, #tpu.memory_space<vmem>>, vector<1x1x32xf32>
    %104 = vector.shape_cast %103 : vector<1x1x32xf32> to vector<1x32xf32>
    %105 = vector.broadcast %104 : vector<1x32xf32> to vector<16x32xf32>
    %106 = arith.addf %102, %105 : vector<16x32xf32>
    %107 = arith.addf %10, %106 : vector<16x32xf32>
    %c0_55 = arith.constant 0 : index
    %c0_56 = arith.constant 0 : index
    %c0_57 = arith.constant 0 : index
    %108 = vector.load %arg14[%c0_55, %c0_56, %c0_57] : memref<2x1x32xf32, #tpu.memory_space<vmem>>, vector<1x1x32xf32>
    %109 = vector.shape_cast %108 : vector<1x1x32xf32> to vector<1x32xf32>
    %c0_58 = arith.constant 0 : index
    %c0_59 = arith.constant 0 : index
    %c0_60 = arith.constant 0 : index
    %110 = vector.load %arg15[%c0_58, %c0_59, %c0_60] : memref<2x1x32xf32, #tpu.memory_space<vmem>>, vector<1x1x32xf32>
    %111 = vector.shape_cast %110 : vector<1x1x32xf32> to vector<1x32xf32>
    %cst_61 = arith.constant dense<0.000000e+00> : vector<16xf32>
    %112 = vector.multi_reduction <add>, %107, %cst_61 [1] : vector<16x32xf32> to vector<16xf32>
    %113 = vector.shape_cast %112 : vector<16xf32> to vector<16x1xf32>
    %cst_62 = arith.constant 3.200000e+01 : f32
    %114 = vector.broadcast %cst_62 : f32 to vector<16x1xf32>
    %115 = arith.divf %113, %114 : vector<16x1xf32>
    %116 = vector.broadcast %115 : vector<16x1xf32> to vector<16x32xf32>
    %117 = arith.subf %107, %116 : vector<16x32xf32>
    %118 = arith.mulf %117, %117 : vector<16x32xf32>
    %cst_63 = arith.constant dense<0.000000e+00> : vector<16xf32>
    %119 = vector.multi_reduction <add>, %118, %cst_63 [1] : vector<16x32xf32> to vector<16xf32>
    %120 = vector.shape_cast %119 : vector<16xf32> to vector<16x1xf32>
    %cst_64 = arith.constant 3.200000e+01 : f32
    %121 = vector.broadcast %cst_64 : f32 to vector<16x1xf32>
    %122 = arith.divf %120, %121 : vector<16x1xf32>
    %123 = vector.broadcast %115 : vector<16x1xf32> to vector<16x32xf32>
    %124 = arith.subf %107, %123 : vector<16x32xf32>
    %cst_65 = arith.constant 9.99999974E-6 : f32
    %125 = vector.broadcast %cst_65 : f32 to vector<16x1xf32>
    %126 = arith.addf %122, %125 : vector<16x1xf32>
    %127 = math.rsqrt %126 : vector<16x1xf32>
    %128 = vector.broadcast %127 : vector<16x1xf32> to vector<16x32xf32>
    %129 = arith.mulf %124, %128 : vector<16x32xf32>
    %130 = vector.broadcast %109 : vector<1x32xf32> to vector<16x32xf32>
    %131 = arith.mulf %129, %130 : vector<16x32xf32>
    %132 = vector.broadcast %111 : vector<1x32xf32> to vector<16x32xf32>
    %133 = arith.addf %131, %132 : vector<16x32xf32>
    %134 = arith.truncf %133 : vector<16x32xf32> to vector<16x32xbf16>
    %c0_66 = arith.constant 0 : index
    %c0_67 = arith.constant 0 : index
    %c0_68 = arith.constant 0 : index
    %135 = vector.load %arg16[%c0_66, %c0_67, %c0_68] : memref<2x32x128xbf16, #tpu.memory_space<vmem>>, vector<1x32x128xbf16>
    %136 = vector.shape_cast %135 : vector<1x32x128xbf16> to vector<32x128xbf16>
    %cst_69 = arith.constant dense<0.000000e+00> : vector<16x128xf32>
    %137 = tpu.matmul %134, %136, %cst_69 {dimension_numbers = #tpu.dot_dimension_numbers<[1], [0], [0], [1], [0, 0, 1, 1], [], []>} : vector<16x32xbf16>, vector<32x128xbf16>, vector<16x128xf32> -> vector<16x128xf32>
    %c0_70 = arith.constant 0 : index
    %c0_71 = arith.constant 0 : index
    %c0_72 = arith.constant 0 : index
    %138 = vector.load %arg17[%c0_70, %c0_71, %c0_72] : memref<2x1x128xf32, #tpu.memory_space<vmem>>, vector<1x1x128xf32>
    %139 = vector.shape_cast %138 : vector<1x1x128xf32> to vector<1x128xf32>
    %140 = vector.broadcast %139 : vector<1x128xf32> to vector<16x128xf32>
    %141 = arith.addf %137, %140 : vector<16x128xf32>
    %142 = arith.mulf %141, %141 : vector<16x128xf32>
    %143 = arith.mulf %141, %142 : vector<16x128xf32>
    %cst_73 = arith.constant 4.471500e-02 : f32
    %144 = vector.broadcast %cst_73 : f32 to vector<16x128xf32>
    %145 = arith.mulf %144, %143 : vector<16x128xf32>
    %146 = arith.addf %141, %145 : vector<16x128xf32>
    %cst_74 = arith.constant 0.797884583 : f32
    %147 = vector.broadcast %cst_74 : f32 to vector<16x128xf32>
    %148 = arith.mulf %147, %146 : vector<16x128xf32>
    %149 = math.tanh %148 : vector<16x128xf32>
    %cst_75 = arith.constant 1.000000e+00 : f32
    %150 = vector.broadcast %cst_75 : f32 to vector<16x128xf32>
    %151 = arith.addf %150, %149 : vector<16x128xf32>
    %cst_76 = arith.constant 5.000000e-01 : f32
    %152 = vector.broadcast %cst_76 : f32 to vector<16x128xf32>
    %153 = arith.mulf %152, %151 : vector<16x128xf32>
    %154 = arith.mulf %141, %153 : vector<16x128xf32>
    %155 = arith.truncf %154 : vector<16x128xf32> to vector<16x128xbf16>
    %c0_77 = arith.constant 0 : index
    %c0_78 = arith.constant 0 : index
    %c0_79 = arith.constant 0 : index
    %156 = vector.load %arg18[%c0_77, %c0_78, %c0_79] : memref<2x128x32xbf16, #tpu.memory_space<vmem>>, vector<1x128x32xbf16>
    %157 = vector.shape_cast %156 : vector<1x128x32xbf16> to vector<128x32xbf16>
    %cst_80 = arith.constant dense<0.000000e+00> : vector<16x32xf32>
    %158 = tpu.matmul %155, %157, %cst_80 {dimension_numbers = #tpu.dot_dimension_numbers<[1], [0], [0], [1], [0, 0, 1, 1], [], []>} : vector<16x128xbf16>, vector<128x32xbf16>, vector<16x32xf32> -> vector<16x32xf32>
    %c0_81 = arith.constant 0 : index
    %c0_82 = arith.constant 0 : index
    %c0_83 = arith.constant 0 : index
    %159 = vector.load %arg19[%c0_81, %c0_82, %c0_83] : memref<2x1x32xf32, #tpu.memory_space<vmem>>, vector<1x1x32xf32>
    %160 = vector.shape_cast %159 : vector<1x1x32xf32> to vector<1x32xf32>
    %161 = vector.broadcast %160 : vector<1x32xf32> to vector<16x32xf32>
    %162 = arith.addf %158, %161 : vector<16x32xf32>
    %163 = arith.addf %107, %162 : vector<16x32xf32>
    %c1 = arith.constant 1 : index
    %c0_84 = arith.constant 0 : index
    %c0_85 = arith.constant 0 : index
    %164 = vector.load %arg4[%c1, %c0_84, %c0_85] : memref<2x1x32xf32, #tpu.memory_space<vmem>>, vector<1x1x32xf32>
    %165 = vector.shape_cast %164 : vector<1x1x32xf32> to vector<1x32xf32>
    %c1_86 = arith.constant 1 : index
    %c0_87 = arith.constant 0 : index
    %c0_88 = arith.constant 0 : index
    %166 = vector.load %arg5[%c1_86, %c0_87, %c0_88] : memref<2x1x32xf32, #tpu.memory_space<vmem>>, vector<1x1x32xf32>
    %167 = vector.shape_cast %166 : vector<1x1x32xf32> to vector<1x32xf32>
    %cst_89 = arith.constant dense<0.000000e+00> : vector<16xf32>
    %168 = vector.multi_reduction <add>, %163, %cst_89 [1] : vector<16x32xf32> to vector<16xf32>
    %169 = vector.shape_cast %168 : vector<16xf32> to vector<16x1xf32>
    %cst_90 = arith.constant 3.200000e+01 : f32
    %170 = vector.broadcast %cst_90 : f32 to vector<16x1xf32>
    %171 = arith.divf %169, %170 : vector<16x1xf32>
    %172 = vector.broadcast %171 : vector<16x1xf32> to vector<16x32xf32>
    %173 = arith.subf %163, %172 : vector<16x32xf32>
    %174 = arith.mulf %173, %173 : vector<16x32xf32>
    %cst_91 = arith.constant dense<0.000000e+00> : vector<16xf32>
    %175 = vector.multi_reduction <add>, %174, %cst_91 [1] : vector<16x32xf32> to vector<16xf32>
    %176 = vector.shape_cast %175 : vector<16xf32> to vector<16x1xf32>
    %cst_92 = arith.constant 3.200000e+01 : f32
    %177 = vector.broadcast %cst_92 : f32 to vector<16x1xf32>
    %178 = arith.divf %176, %177 : vector<16x1xf32>
    %179 = vector.broadcast %171 : vector<16x1xf32> to vector<16x32xf32>
    %180 = arith.subf %163, %179 : vector<16x32xf32>
    %cst_93 = arith.constant 9.99999974E-6 : f32
    %181 = vector.broadcast %cst_93 : f32 to vector<16x1xf32>
    %182 = arith.addf %178, %181 : vector<16x1xf32>
    %183 = math.rsqrt %182 : vector<16x1xf32>
    %184 = vector.broadcast %183 : vector<16x1xf32> to vector<16x32xf32>
    %185 = arith.mulf %180, %184 : vector<16x32xf32>
    %186 = vector.broadcast %165 : vector<1x32xf32> to vector<16x32xf32>
    %187 = arith.mulf %185, %186 : vector<16x32xf32>
    %188 = vector.broadcast %167 : vector<1x32xf32> to vector<16x32xf32>
    %189 = arith.addf %187, %188 : vector<16x32xf32>
    %190 = arith.truncf %189 : vector<16x32xf32> to vector<16x32xbf16>
    %c1_94 = arith.constant 1 : index
    %c0_95 = arith.constant 0 : index
    %c0_96 = arith.constant 0 : index
    %191 = vector.load %arg6[%c1_94, %c0_95, %c0_96] : memref<2x32x32xbf16, #tpu.memory_space<vmem>>, vector<1x32x32xbf16>
    %192 = vector.shape_cast %191 : vector<1x32x32xbf16> to vector<32x32xbf16>
    %cst_97 = arith.constant dense<0.000000e+00> : vector<16x32xf32>
    %193 = tpu.matmul %190, %192, %cst_97 {dimension_numbers = #tpu.dot_dimension_numbers<[1], [0], [0], [1], [0, 0, 1, 1], [], []>} : vector<16x32xbf16>, vector<32x32xbf16>, vector<16x32xf32> -> vector<16x32xf32>
    %c1_98 = arith.constant 1 : index
    %c0_99 = arith.constant 0 : index
    %c0_100 = arith.constant 0 : index
    %194 = vector.load %arg7[%c1_98, %c0_99, %c0_100] : memref<2x1x32xf32, #tpu.memory_space<vmem>>, vector<1x1x32xf32>
    %195 = vector.shape_cast %194 : vector<1x1x32xf32> to vector<1x32xf32>
    %196 = vector.broadcast %195 : vector<1x32xf32> to vector<16x32xf32>
    %197 = arith.addf %193, %196 : vector<16x32xf32>
    %c1_101 = arith.constant 1 : index
    %c0_102 = arith.constant 0 : index
    %c0_103 = arith.constant 0 : index
    %198 = vector.load %arg8[%c1_101, %c0_102, %c0_103] : memref<2x32x32xbf16, #tpu.memory_space<vmem>>, vector<1x32x32xbf16>
    %199 = vector.shape_cast %198 : vector<1x32x32xbf16> to vector<32x32xbf16>
    %cst_104 = arith.constant dense<0.000000e+00> : vector<16x32xf32>
    %200 = tpu.matmul %190, %199, %cst_104 {dimension_numbers = #tpu.dot_dimension_numbers<[1], [0], [0], [1], [0, 0, 1, 1], [], []>} : vector<16x32xbf16>, vector<32x32xbf16>, vector<16x32xf32> -> vector<16x32xf32>
    %c1_105 = arith.constant 1 : index
    %c0_106 = arith.constant 0 : index
    %c0_107 = arith.constant 0 : index
    %201 = vector.load %arg9[%c1_105, %c0_106, %c0_107] : memref<2x1x32xf32, #tpu.memory_space<vmem>>, vector<1x1x32xf32>
    %202 = vector.shape_cast %201 : vector<1x1x32xf32> to vector<1x32xf32>
    %203 = vector.broadcast %202 : vector<1x32xf32> to vector<16x32xf32>
    %204 = arith.addf %200, %203 : vector<16x32xf32>
    %c1_108 = arith.constant 1 : index
    %c0_109 = arith.constant 0 : index
    %c0_110 = arith.constant 0 : index
    %205 = vector.load %arg10[%c1_108, %c0_109, %c0_110] : memref<2x32x32xbf16, #tpu.memory_space<vmem>>, vector<1x32x32xbf16>
    %206 = vector.shape_cast %205 : vector<1x32x32xbf16> to vector<32x32xbf16>
    %cst_111 = arith.constant dense<0.000000e+00> : vector<16x32xf32>
    %207 = tpu.matmul %190, %206, %cst_111 {dimension_numbers = #tpu.dot_dimension_numbers<[1], [0], [0], [1], [0, 0, 1, 1], [], []>} : vector<16x32xbf16>, vector<32x32xbf16>, vector<16x32xf32> -> vector<16x32xf32>
    %c1_112 = arith.constant 1 : index
    %c0_113 = arith.constant 0 : index
    %c0_114 = arith.constant 0 : index
    %208 = vector.load %arg11[%c1_112, %c0_113, %c0_114] : memref<2x1x32xf32, #tpu.memory_space<vmem>>, vector<1x1x32xf32>
    %209 = vector.shape_cast %208 : vector<1x1x32xf32> to vector<1x32xf32>
    %210 = vector.broadcast %209 : vector<1x32xf32> to vector<16x32xf32>
    %211 = arith.addf %207, %210 : vector<16x32xf32>
    %212 = vector.shape_cast %197 : vector<16x32xf32> to vector<2x8x32xf32>
    %213 = vector.shape_cast %204 : vector<16x32xf32> to vector<2x8x32xf32>
    %214 = vector.shape_cast %211 : vector<16x32xf32> to vector<2x8x32xf32>
    %215 = tpu.concatenate %212, %212, %212, %212 in 1 : vector<2x8x32xf32>, vector<2x8x32xf32>, vector<2x8x32xf32>, vector<2x8x32xf32> -> vector<2x32x32xf32>
    %216 = vector.shape_cast %11 : vector<32x32xf32> to vector<1x32x32xf32>
    %217 = vector.broadcast %216 : vector<1x32x32xf32> to vector<2x32x32xf32>
    %218 = arith.mulf %215, %217 : vector<2x32x32xf32>
    %219 = arith.truncf %218 : vector<2x32x32xf32> to vector<2x32x32xbf16>
    %220 = arith.truncf %213 : vector<2x8x32xf32> to vector<2x8x32xbf16>
    "tpu.trace_start"() <{level = 10 : i32, message = "brc,bkc->brk"}> : () -> ()
    %cst_115 = arith.constant dense<0.000000e+00> : vector<2x32x8xf32>
    %221 = tpu.matmul %219, %220, %cst_115 {dimension_numbers = #tpu.dot_dimension_numbers<[2], [2], [1], [1], [0, 0, 0, 1, 1, 1], [0], [0]>} : vector<2x32x32xbf16>, vector<2x8x32xbf16>, vector<2x32x8xf32> -> vector<2x32x8xf32>
    "tpu.trace_stop"() : () -> ()
    %cst_116 = arith.constant 0.353553385 : f32
    %222 = vector.broadcast %cst_116 : f32 to vector<2x32x8xf32>
    %223 = arith.mulf %221, %222 : vector<2x32x8xf32>
    %cst_117 = arith.constant dense<0xFF800000> : vector<2x32xf32>
    %224 = vector.multi_reduction <maximumf>, %223, %cst_117 [2] : vector<2x32x8xf32> to vector<2x32xf32>
    %225 = vector.shape_cast %224 : vector<2x32xf32> to vector<2x32x1xf32>
    %226 = vector.broadcast %225 : vector<2x32x1xf32> to vector<2x32x8xf32>
    %227 = arith.subf %223, %226 : vector<2x32x8xf32>
    %228 = math.exp %227 : vector<2x32x8xf32>
    %cst_118 = arith.constant dense<0.000000e+00> : vector<2x32xf32>
    %229 = vector.multi_reduction <add>, %228, %cst_118 [2] : vector<2x32x8xf32> to vector<2x32xf32>
    %230 = vector.shape_cast %229 : vector<2x32xf32> to vector<2x32x1xf32>
    %231 = tpu.reciprocal %230 {approx = true} : vector<2x32x1xf32> -> vector<2x32x1xf32>
    %232 = vector.broadcast %231 : vector<2x32x1xf32> to vector<2x32x8xf32>
    %233 = arith.mulf %228, %232 : vector<2x32x8xf32>
    %c1_119 = arith.constant 1 : index
    %c0_120 = arith.constant 0 : index
    %c0_121 = arith.constant 0 : index
    %c0_122 = arith.constant 0 : index
    %234 = vector.load %arg23[%c1_119, %c0_120, %c0_121, %c0_122] : memref<2x2x32x8xf32, #tpu.memory_space<vmem>>, vector<1x2x32x8xf32>
    %235 = vector.shape_cast %234 : vector<1x2x32x8xf32> to vector<2x32x8xf32>
    %236 = vector.shape_cast %233 : vector<2x32x8xf32> to vector<1x2x32x8xf32>
    tpu.vector_store %arg23[%c1_119, %c0_120, %c0_121, %c0_122], %236 {strides = array<i32>} : memref<2x2x32x8xf32, #tpu.memory_space<vmem>>, vector<1x2x32x8xf32>,
    %237 = arith.truncf %233 : vector<2x32x8xf32> to vector<2x32x8xbf16>
    %238 = arith.truncf %214 : vector<2x8x32xf32> to vector<2x8x32xbf16>
    "tpu.trace_start"() <{level = 10 : i32, message = "brk,bkc->brc"}> : () -> ()
    %cst_123 = arith.constant dense<0.000000e+00> : vector<2x32x32xf32>
    %239 = tpu.matmul %237, %238, %cst_123 {dimension_numbers = #tpu.dot_dimension_numbers<[2], [1], [1], [2], [0, 0, 0, 1, 1, 2], [0], [0]>} : vector<2x32x8xbf16>, vector<2x8x32xbf16>, vector<2x32x32xf32> -> vector<2x32x32xf32>
    "tpu.trace_stop"() : () -> ()
    %240 = vector.shape_cast %11 : vector<32x32xf32> to vector<1x32x32xf32>
    %241 = vector.broadcast %240 : vector<1x32x32xf32> to vector<2x32x32xf32>
    %242 = arith.mulf %239, %241 : vector<2x32x32xf32>
    %243 = vector.extract_strided_slice %242 {offsets = [0, 0, 0], sizes = [2, 8, 32], strides = [1, 1, 1]} : vector<2x32x32xf32> to vector<2x8x32xf32>
    %244 = vector.extract_strided_slice %242 {offsets = [0, 8, 0], sizes = [2, 8, 32], strides = [1, 1, 1]} : vector<2x32x32xf32> to vector<2x8x32xf32>
    %245 = arith.addf %243, %244 : vector<2x8x32xf32>
    %246 = vector.extract_strided_slice %242 {offsets = [0, 16, 0], sizes = [2, 8, 32], strides = [1, 1, 1]} : vector<2x32x32xf32> to vector<2x8x32xf32>
    %247 = arith.addf %245, %246 : vector<2x8x32xf32>
    %248 = vector.extract_strided_slice %242 {offsets = [0, 24, 0], sizes = [2, 8, 32], strides = [1, 1, 1]} : vector<2x32x32xf32> to vector<2x8x32xf32>
    %249 = arith.addf %247, %248 : vector<2x8x32xf32>
    %250 = vector.shape_cast %249 : vector<2x8x32xf32> to vector<16x32xf32>
    %251 = arith.truncf %250 : vector<16x32xf32> to vector<16x32xbf16>
    %c1_124 = arith.constant 1 : index
    %c0_125 = arith.constant 0 : index
    %c0_126 = arith.constant 0 : index
    %252 = vector.load %arg12[%c1_124, %c0_125, %c0_126] : memref<2x32x32xbf16, #tpu.memory_space<vmem>>, vector<1x32x32xbf16>
    %253 = vector.shape_cast %252 : vector<1x32x32xbf16> to vector<32x32xbf16>
    %cst_127 = arith.constant dense<0.000000e+00> : vector<16x32xf32>
    %254 = tpu.matmul %251, %253, %cst_127 {dimension_numbers = #tpu.dot_dimension_numbers<[1], [0], [0], [1], [0, 0, 1, 1], [], []>} : vector<16x32xbf16>, vector<32x32xbf16>, vector<16x32xf32> -> vector<16x32xf32>
    %c1_128 = arith.constant 1 : index
    %c0_129 = arith.constant 0 : index
    %c0_130 = arith.constant 0 : index
    %255 = vector.load %arg13[%c1_128, %c0_129, %c0_130] : memref<2x1x32xf32, #tpu.memory_space<vmem>>, vector<1x1x32xf32>
    %256 = vector.shape_cast %255 : vector<1x1x32xf32> to vector<1x32xf32>
    %257 = vector.broadcast %256 : vector<1x32xf32> to vector<16x32xf32>
    %258 = arith.addf %254, %257 : vector<16x32xf32>
    %259 = arith.addf %163, %258 : vector<16x32xf32>
    %c1_131 = arith.constant 1 : index
    %c0_132 = arith.constant 0 : index
    %c0_133 = arith.constant 0 : index
    %260 = vector.load %arg14[%c1_131, %c0_132, %c0_133] : memref<2x1x32xf32, #tpu.memory_space<vmem>>, vector<1x1x32xf32>
    %261 = vector.shape_cast %260 : vector<1x1x32xf32> to vector<1x32xf32>
    %c1_134 = arith.constant 1 : index
    %c0_135 = arith.constant 0 : index
    %c0_136 = arith.constant 0 : index
    %262 = vector.load %arg15[%c1_134, %c0_135, %c0_136] : memref<2x1x32xf32, #tpu.memory_space<vmem>>, vector<1x1x32xf32>
    %263 = vector.shape_cast %262 : vector<1x1x32xf32> to vector<1x32xf32>
    %cst_137 = arith.constant dense<0.000000e+00> : vector<16xf32>
    %264 = vector.multi_reduction <add>, %259, %cst_137 [1] : vector<16x32xf32> to vector<16xf32>
    %265 = vector.shape_cast %264 : vector<16xf32> to vector<16x1xf32>
    %cst_138 = arith.constant 3.200000e+01 : f32
    %266 = vector.broadcast %cst_138 : f32 to vector<16x1xf32>
    %267 = arith.divf %265, %266 : vector<16x1xf32>
    %268 = vector.broadcast %267 : vector<16x1xf32> to vector<16x32xf32>
    %269 = arith.subf %259, %268 : vector<16x32xf32>
    %270 = arith.mulf %269, %269 : vector<16x32xf32>
    %cst_139 = arith.constant dense<0.000000e+00> : vector<16xf32>
    %271 = vector.multi_reduction <add>, %270, %cst_139 [1] : vector<16x32xf32> to vector<16xf32>
    %272 = vector.shape_cast %271 : vector<16xf32> to vector<16x1xf32>
    %cst_140 = arith.constant 3.200000e+01 : f32
    %273 = vector.broadcast %cst_140 : f32 to vector<16x1xf32>
    %274 = arith.divf %272, %273 : vector<16x1xf32>
    %275 = vector.broadcast %267 : vector<16x1xf32> to vector<16x32xf32>
    %276 = arith.subf %259, %275 : vector<16x32xf32>
    %cst_141 = arith.constant 9.99999974E-6 : f32
    %277 = vector.broadcast %cst_141 : f32 to vector<16x1xf32>
    %278 = arith.addf %274, %277 : vector<16x1xf32>
    %279 = math.rsqrt %278 : vector<16x1xf32>
    %280 = vector.broadcast %279 : vector<16x1xf32> to vector<16x32xf32>
    %281 = arith.mulf %276, %280 : vector<16x32xf32>
    %282 = vector.broadcast %261 : vector<1x32xf32> to vector<16x32xf32>
    %283 = arith.mulf %281, %282 : vector<16x32xf32>
    %284 = vector.broadcast %263 : vector<1x32xf32> to vector<16x32xf32>
    %285 = arith.addf %283, %284 : vector<16x32xf32>
    %286 = arith.truncf %285 : vector<16x32xf32> to vector<16x32xbf16>
    %c1_142 = arith.constant 1 : index
    %c0_143 = arith.constant 0 : index
    %c0_144 = arith.constant 0 : index
    %287 = vector.load %arg16[%c1_142, %c0_143, %c0_144] : memref<2x32x128xbf16, #tpu.memory_space<vmem>>, vector<1x32x128xbf16>
    %288 = vector.shape_cast %287 : vector<1x32x128xbf16> to vector<32x128xbf16>
    %cst_145 = arith.constant dense<0.000000e+00> : vector<16x128xf32>
    %289 = tpu.matmul %286, %288, %cst_145 {dimension_numbers = #tpu.dot_dimension_numbers<[1], [0], [0], [1], [0, 0, 1, 1], [], []>} : vector<16x32xbf16>, vector<32x128xbf16>, vector<16x128xf32> -> vector<16x128xf32>
    %c1_146 = arith.constant 1 : index
    %c0_147 = arith.constant 0 : index
    %c0_148 = arith.constant 0 : index
    %290 = vector.load %arg17[%c1_146, %c0_147, %c0_148] : memref<2x1x128xf32, #tpu.memory_space<vmem>>, vector<1x1x128xf32>
    %291 = vector.shape_cast %290 : vector<1x1x128xf32> to vector<1x128xf32>
    %292 = vector.broadcast %291 : vector<1x128xf32> to vector<16x128xf32>
    %293 = arith.addf %289, %292 : vector<16x128xf32>
    %294 = arith.mulf %293, %293 : vector<16x128xf32>
    %295 = arith.mulf %293, %294 : vector<16x128xf32>
    %cst_149 = arith.constant 4.471500e-02 : f32
    %296 = vector.broadcast %cst_149 : f32 to vector<16x128xf32>
    %297 = arith.mulf %296, %295 : vector<16x128xf32>
    %298 = arith.addf %293, %297 : vector<16x128xf32>
    %cst_150 = arith.constant 0.797884583 : f32
    %299 = vector.broadcast %cst_150 : f32 to vector<16x128xf32>
    %300 = arith.mulf %299, %298 : vector<16x128xf32>
    %301 = math.tanh %300 : vector<16x128xf32>
    %cst_151 = arith.constant 1.000000e+00 : f32
    %302 = vector.broadcast %cst_151 : f32 to vector<16x128xf32>
    %303 = arith.addf %302, %301 : vector<16x128xf32>
    %cst_152 = arith.constant 5.000000e-01 : f32
    %304 = vector.broadcast %cst_152 : f32 to vector<16x128xf32>
    %305 = arith.mulf %304, %303 : vector<16x128xf32>
    %306 = arith.mulf %293, %305 : vector<16x128xf32>
    %307 = arith.truncf %306 : vector<16x128xf32> to vector<16x128xbf16>
    %c1_153 = arith.constant 1 : index
    %c0_154 = arith.constant 0 : index
    %c0_155 = arith.constant 0 : index
    %308 = vector.load %arg18[%c1_153, %c0_154, %c0_155] : memref<2x128x32xbf16, #tpu.memory_space<vmem>>, vector<1x128x32xbf16>
    %309 = vector.shape_cast %308 : vector<1x128x32xbf16> to vector<128x32xbf16>
    %cst_156 = arith.constant dense<0.000000e+00> : vector<16x32xf32>
    %310 = tpu.matmul %307, %309, %cst_156 {dimension_numbers = #tpu.dot_dimension_numbers<[1], [0], [0], [1], [0, 0, 1, 1], [], []>} : vector<16x128xbf16>, vector<128x32xbf16>, vector<16x32xf32> -> vector<16x32xf32>
    %c1_157 = arith.constant 1 : index
    %c0_158 = arith.constant 0 : index
    %c0_159 = arith.constant 0 : index
    %311 = vector.load %arg19[%c1_157, %c0_158, %c0_159] : memref<2x1x32xf32, #tpu.memory_space<vmem>>, vector<1x1x32xf32>
    %312 = vector.shape_cast %311 : vector<1x1x32xf32> to vector<1x32xf32>
    %313 = vector.broadcast %312 : vector<1x32xf32> to vector<16x32xf32>
    %314 = arith.addf %310, %313 : vector<16x32xf32>
    %315 = arith.addf %259, %314 : vector<16x32xf32>
    %c0_160 = arith.constant 0 : index
    %c0_161 = arith.constant 0 : index
    %316 = vector.load %arg20[%c0_160, %c0_161] : memref<1x32xf32, #tpu.memory_space<vmem>>, vector<1x32xf32>
    %c0_162 = arith.constant 0 : index
    %c0_163 = arith.constant 0 : index
    %317 = vector.load %arg21[%c0_162, %c0_163] : memref<1x32xf32, #tpu.memory_space<vmem>>, vector<1x32xf32>
    %cst_164 = arith.constant dense<0.000000e+00> : vector<16xf32>
    %318 = vector.multi_reduction <add>, %315, %cst_164 [1] : vector<16x32xf32> to vector<16xf32>
    %319 = vector.shape_cast %318 : vector<16xf32> to vector<16x1xf32>
    %cst_165 = arith.constant 3.200000e+01 : f32
    %320 = vector.broadcast %cst_165 : f32 to vector<16x1xf32>
    %321 = arith.divf %319, %320 : vector<16x1xf32>
    %322 = vector.broadcast %321 : vector<16x1xf32> to vector<16x32xf32>
    %323 = arith.subf %315, %322 : vector<16x32xf32>
    %324 = arith.mulf %323, %323 : vector<16x32xf32>
    %cst_166 = arith.constant dense<0.000000e+00> : vector<16xf32>
    %325 = vector.multi_reduction <add>, %324, %cst_166 [1] : vector<16x32xf32> to vector<16xf32>
    %326 = vector.shape_cast %325 : vector<16xf32> to vector<16x1xf32>
    %cst_167 = arith.constant 3.200000e+01 : f32
    %327 = vector.broadcast %cst_167 : f32 to vector<16x1xf32>
    %328 = arith.divf %326, %327 : vector<16x1xf32>
    %329 = vector.broadcast %321 : vector<16x1xf32> to vector<16x32xf32>
    %330 = arith.subf %315, %329 : vector<16x32xf32>
    %cst_168 = arith.constant 9.99999974E-6 : f32
    %331 = vector.broadcast %cst_168 : f32 to vector<16x1xf32>
    %332 = arith.addf %328, %331 : vector<16x1xf32>
    %333 = math.rsqrt %332 : vector<16x1xf32>
    %334 = vector.broadcast %333 : vector<16x1xf32> to vector<16x32xf32>
    %335 = arith.mulf %330, %334 : vector<16x32xf32>
    %336 = vector.broadcast %316 : vector<1x32xf32> to vector<16x32xf32>
    %337 = arith.mulf %335, %336 : vector<16x32xf32>
    %338 = vector.broadcast %317 : vector<1x32xf32> to vector<16x32xf32>
    %339 = arith.addf %337, %338 : vector<16x32xf32>
    %c0_169 = arith.constant 0 : index
    %c0_170 = arith.constant 0 : index
    %340 = vector.load %arg22[%c0_169, %c0_170] : memref<16x32xf32, #tpu.memory_space<vmem>>, vector<16x32xf32>
    tpu.vector_store %arg22[%c0_169, %c0_170], %339 {strides = array<i32>} : memref<16x32xf32, #tpu.memory_space<vmem>>, vector<16x32xf32>,
    return
  }
}

</mosaic_0001>

<llo_original>
// kernel: encoder_forward.1
$region0: #{encoder_forward.1}
  #allocation0 [shape = 'u32[]', space=smem, size = 0x4, offset = 0x4, fixed_abs, tag = 'smem constant byte address 0x4 - core index']
  #allocation1 [shape = 'u32[144,128]{1,0:T(1,128)}', space=vmem, size = 0x12000, scoped, tag = 'internal scratch']
  %s0 = inlined_call_operand.vmem [shape: s32[16,1], index: 0, kind: input, shape index: {}]
  %s1 = inlined_call_operand.vmem [shape: f32[32,32], index: 1, kind: input, shape index: {}]
  %s2 = inlined_call_operand.vmem [shape: f32[64,32], index: 2, kind: input, shape index: {}]
  %s3 = inlined_call_operand.vmem [shape: f32[16,32], index: 3, kind: input, shape index: {}]
  %s4 = inlined_call_operand.vmem [shape: f32[2,1,32], index: 4, kind: input, shape index: {}]
  %s5 = inlined_call_operand.vmem [shape: f32[2,1,32], index: 5, kind: input, shape index: {}]
  %s6 = inlined_call_operand.vmem [shape: bf16[2,32,32], index: 6, kind: input, shape index: {}]
  %s7 = inlined_call_operand.vmem [shape: f32[2,1,32], index: 7, kind: input, shape index: {}]
  %s8 = inlined_call_operand.vmem [shape: bf16[2,32,32], index: 8, kind: input, shape index: {}]
  %s9 = inlined_call_operand.vmem [shape: f32[2,1,32], index: 9, kind: input, shape index: {}]
  %s10 = inlined_call_operand.vmem [shape: bf16[2,32,32], index: 10, kind: input, shape index: {}]
  %s11 = inlined_call_operand.vmem [shape: f32[2,1,32], index: 11, kind: input, shape index: {}]
  %s12 = inlined_call_operand.vmem [shape: bf16[2,32,32], index: 12, kind: input, shape index: {}]
  %s13 = inlined_call_operand.vmem [shape: f32[2,1,32], index: 13, kind: input, shape index: {}]
  %s14 = inlined_call_operand.vmem [shape: f32[2,1,32], index: 14, kind: input, shape index: {}]
  %s15 = inlined_call_operand.vmem [shape: f32[2,1,32], index: 15, kind: input, shape index: {}]
  %s16 = inlined_call_operand.vmem [shape: bf16[2,32,128], index: 16, kind: input, shape index: {}]
  %s17 = inlined_call_operand.vmem [shape: f32[2,1,128], index: 17, kind: input, shape index: {}]
  %s18 = inlined_call_operand.vmem [shape: bf16[2,128,32], index: 18, kind: input, shape index: {}]
  %s19 = inlined_call_operand.vmem [shape: f32[2,1,32], index: 19, kind: input, shape index: {}]
  %s20 = inlined_call_operand.vmem [shape: f32[1,32], index: 20, kind: input, shape index: {}]
  %s21 = inlined_call_operand.vmem [shape: f32[1,32], index: 21, kind: input, shape index: {}]
  %s22 = inlined_call_operand.hbm [shape: f32[16,32], index: 22, kind: output, shape index: {0}]
  %s23 = inlined_call_operand.hbm [shape: f32[2,2,32,8], index: 23, kind: output, shape index: {1}]
  %24 = xla_tuple %s22, %s23
  %s25 = sld [smem:[#allocation0]]
  $region106: #{encoder_forward.1} parent=0
    _
  %s27 = ssub.s32 1, %s25
  %s28 = scalar_select 0, %s27, %s25
  $region1: #{encoder_forward.1} parent=0
    #allocation2 [shape = 'u8[8192]{0}', space=vmem, size = 0x2000, scoped, tag = 'output window, operand 0, single buffered']
    #allocation3 [shape = 's32[1]{0}', space=sflag, size = 0x4, scoped, tag = 'scoped memory for encoder_forward.1']
    #allocation4 [shape = 'u8[65536]{0}', space=vmem, size = 0x10000, scoped, tag = 'output window, operand 1, single buffered']
    #allocation5 [shape = 's32[1]{0}', space=sflag, size = 0x4, scoped, tag = 'scoped memory for encoder_forward.1']
    %29 = vsyncpa [#allocation3], 0
    %30 = vsyncpa [#allocation5], 0
    // Predicated region
    $region2: #{encoder_forward.1} parent=1 // pred_check
      _
    $region3: #{encoder_forward.1} parent=1 // pred_check_branch
      %32 = sbr.rel (0) target = $region5
    $region4: #{encoder_forward.1} parent=1 // pred_region
      _
    $region5: #{encoder_forward.1} parent=1 // pred_fallthru
      _
    // Predicated region
    $region6: #{encoder_forward.1} parent=1 // pred_check
      _
    $region7: #{encoder_forward.1} parent=1 // pred_check_branch
      %34 = sbr.rel (0) target = $region9
    $region8: #{encoder_forward.1} parent=1 // pred_region
      _
    $region9: #{encoder_forward.1} parent=1 // pred_fallthru
      _
    // Predicated region
    $region10: #{encoder_forward.1} parent=1 // pred_check
      _
    $region11: #{encoder_forward.1} parent=1 // pred_check_branch
      %36 = sbr.rel (0) target = $region13
    $region12: #{encoder_forward.1} parent=1 // pred_region
      _
    $region13: #{encoder_forward.1} parent=1 // pred_fallthru
      _
    // Predicated region
    $region14: #{encoder_forward.1} parent=1 // pred_check
      _
    $region15: #{encoder_forward.1} parent=1 // pred_check_branch
      %38 = sbr.rel (0) target = $region17
    $region16: #{encoder_forward.1} parent=1 // pred_region
      _
    $region17: #{encoder_forward.1} parent=1 // pred_fallthru
      _
    // Predicated region
    $region18: #{encoder_forward.1} parent=1 // pred_check
      _
    $region19: #{encoder_forward.1} parent=1 // pred_check_branch
      %40 = sbr.rel (0) target = $region21
    $region20: #{encoder_forward.1} parent=1 // pred_region
      _
    $region21: #{encoder_forward.1} parent=1 // pred_fallthru
      _
    // Predicated region
    $region22: #{encoder_forward.1} parent=1 // pred_check
      _
    $region23: #{encoder_forward.1} parent=1 // pred_check_branch
      %42 = sbr.rel (0) target = $region25
    $region24: #{encoder_forward.1} parent=1 // pred_region
      _
    $region25: #{encoder_forward.1} parent=1 // pred_fallthru
      _
    // Predicated region
    $region26: #{encoder_forward.1} parent=1 // pred_check
      _
    $region27: #{encoder_forward.1} parent=1 // pred_check_branch
      %44 = sbr.rel (0) target = $region29
    $region28: #{encoder_forward.1} parent=1 // pred_region
      _
    $region29: #{encoder_forward.1} parent=1 // pred_fallthru
      _
    // Predicated region
    $region30: #{encoder_forward.1} parent=1 // pred_check
      _
    $region31: #{encoder_forward.1} parent=1 // pred_check_branch
      %46 = sbr.rel (0) target = $region33
    $region32: #{encoder_forward.1} parent=1 // pred_region
      _
    $region33: #{encoder_forward.1} parent=1 // pred_fallthru
      _
    // Predicated region
    $region34: #{encoder_forward.1} parent=1 // pred_check
      _
    $region35: #{encoder_forward.1} parent=1 // pred_check_branch
      %48 = sbr.rel (0) target = $region37
    $region36: #{encoder_forward.1} parent=1 // pred_region
      _
    $region37: #{encoder_forward.1} parent=1 // pred_fallthru
      _
    // Predicated region
    $region38: #{encoder_forward.1} parent=1 // pred_check
      _
    $region39: #{encoder_forward.1} parent=1 // pred_check_branch
      %50 = sbr.rel (0) target = $region41
    $region40: #{encoder_forward.1} parent=1 // pred_region
      _
    $region41: #{encoder_forward.1} parent=1 // pred_fallthru
      _
    // Predicated region
    $region42: #{encoder_forward.1} parent=1 // pred_check
      _
    $region43: #{encoder_forward.1} parent=1 // pred_check_branch
      %52 = sbr.rel (0) target = $region45
    $region44: #{encoder_forward.1} parent=1 // pred_region
      _
    $region45: #{encoder_forward.1} parent=1 // pred_fallthru
      _
    // Predicated region
    $region46: #{encoder_forward.1} parent=1 // pred_check
      _
    $region47: #{encoder_forward.1} parent=1 // pred_check_branch
      %54 = sbr.rel (0) target = $region49
    $region48: #{encoder_forward.1} parent=1 // pred_region
      _
    $region49: #{encoder_forward.1} parent=1 // pred_fallthru
      _
    // Predicated region
    $region50: #{encoder_forward.1} parent=1 // pred_check
      _
    $region51: #{encoder_forward.1} parent=1 // pred_check_branch
      %56 = sbr.rel (0) target = $region53
    $region52: #{encoder_forward.1} parent=1 // pred_region
      _
    $region53: #{encoder_forward.1} parent=1 // pred_fallthru
      _
    // Predicated region
    $region54: #{encoder_forward.1} parent=1 // pred_check
      _
    $region55: #{encoder_forward.1} parent=1 // pred_check_branch
      %58 = sbr.rel (0) target = $region57
    $region56: #{encoder_forward.1} parent=1 // pred_region
      _
    $region57: #{encoder_forward.1} parent=1 // pred_fallthru
      _
    // Predicated region
    $region58: #{encoder_forward.1} parent=1 // pred_check
      _
    $region59: #{encoder_forward.1} parent=1 // pred_check_branch
      %60 = sbr.rel (0) target = $region61
    $region60: #{encoder_forward.1} parent=1 // pred_region
      _
    $region61: #{encoder_forward.1} parent=1 // pred_fallthru
      _
    // Predicated region
    $region62: #{encoder_forward.1} parent=1 // pred_check
      _
    $region63: #{encoder_forward.1} parent=1 // pred_check_branch
      %62 = sbr.rel (0) target = $region65
    $region64: #{encoder_forward.1} parent=1 // pred_region
      _
    $region65: #{encoder_forward.1} parent=1 // pred_fallthru
      _
    // Predicated region
    $region66: #{encoder_forward.1} parent=1 // pred_check
      _
    $region67: #{encoder_forward.1} parent=1 // pred_check_branch
      %64 = sbr.rel (0) target = $region69
    $region68: #{encoder_forward.1} parent=1 // pred_region
      _
    $region69: #{encoder_forward.1} parent=1 // pred_fallthru
      _
    // Predicated region
    $region70: #{encoder_forward.1} parent=1 // pred_check
      _
    $region71: #{encoder_forward.1} parent=1 // pred_check_branch
      %66 = sbr.rel (0) target = $region73
    $region72: #{encoder_forward.1} parent=1 // pred_region
      _
    $region73: #{encoder_forward.1} parent=1 // pred_fallthru
      _
    // Predicated region
    $region74: #{encoder_forward.1} parent=1 // pred_check
      _
    $region75: #{encoder_forward.1} parent=1 // pred_check_branch
      %68 = sbr.rel (0) target = $region77
    $region76: #{encoder_forward.1} parent=1 // pred_region
      _
    $region77: #{encoder_forward.1} parent=1 // pred_fallthru
      _
    // Predicated region
    $region78: #{encoder_forward.1} parent=1 // pred_check
      _
    $region79: #{encoder_forward.1} parent=1 // pred_check_branch
      %70 = sbr.rel (0) target = $region81
    $region80: #{encoder_forward.1} parent=1 // pred_region
      _
    $region81: #{encoder_forward.1} parent=1 // pred_fallthru
      _
    // Predicated region
    $region82: #{encoder_forward.1} parent=1 // pred_check
      _
    $region83: #{encoder_forward.1} parent=1 // pred_check_branch
      %72 = sbr.rel (0) target = $region85
    $region84: #{encoder_forward.1} parent=1 // pred_region
      _
    $region85: #{encoder_forward.1} parent=1 // pred_fallthru
      _
    // Predicated region
    $region86: #{encoder_forward.1} parent=1 // pred_check
      _
    $region87: #{encoder_forward.1} parent=1 // pred_check_branch
      %74 = sbr.rel (0) target = $region89
    $region88: #{encoder_forward.1} parent=1 // pred_region
      _
    $region89: #{encoder_forward.1} parent=1 // pred_fallthru
      _
    %v76 = vld [vmem:[%s0] sm:$0xff]
    %v77 = vld [vmem:[%s0 + $0x8] sm:$0xff]
    %v78 = vlaneseq
    %v79 = vand.u32 %v78, 127
    %80 = vset.pattern.permute.xlu0 0
    %81 = vperm.xlu0 %80, %v76
    %v82 = vpop.permute.xlu0 %81
    %83 = vset.pattern.permute.xlu0 0
    %84 = vperm.xlu0 %83, %v77
    %v85 = vpop.permute.xlu0 %84
    %vm86 = vcmp.eq.s32.totalorder %v79, %v82
    %vm87 = vcmp.eq.s32.totalorder %v79, %v85
    %v88 = vsel %vm86, 1, 0
    %v89 = vsel %vm87, 1, 0
    %v90 = vcvt.s32.f32 %v88
    %v91 = vcvt.s32.f32 %v89
    %v92 = vld [vmem:[%s2] sm:$0xff]
    %v93 = vld [vmem:[%s2 + $0x8] sm:$0xff]
    %v94 = vld [vmem:[%s2 + $0x10] sm:$0xff]
    %v95 = vld [vmem:[%s2 + $0x18] sm:$0xff]
    %v96 = vld [vmem:[%s2 + $0x20] sm:$0xff]
    %v97 = vld [vmem:[%s2 + $0x28] sm:$0xff]
    %v98 = vld [vmem:[%s2 + $0x30] sm:$0xff]
    %v99 = vld [vmem:[%s2 + $0x38] sm:$0xff]
    %v100 = vld [vmem:[%s3] sm:$0xff]
    %vm101 = vcmask 523264
    %v103 = vsel %vm101, %v90, 0
    %v106 = vsel %vm101, %v91, 0
    %108 = vmatprep.subr.mxu0 0.0
    %109 = vmatpush1.msra.mxu0 %v92
    %110 = vmatprep.subr.mxu0 0.0
    %111 = vmatpush1.msra.mxu0 %v93
    %112 = vmatprep.subr.mxu0 0.0
    %113 = vmatpush1.msra.mxu0 %v94
    %114 = vmatprep.subr.mxu0 0.0
    %115 = vmatpush1.msra.mxu0 %v95
    %116 = vmatprep.subr.mxu0 0.0
    %117 = vmatpush1.msra.mxu0 %v96
    %118 = vmatprep.subr.mxu0 0.0
    %119 = vmatpush1.msra.mxu0 %v97
    %120 = vmatprep.subr.mxu0 0.0
    %121 = vmatpush1.msra.mxu0 %v98
    %122 = vmatprep.subr.mxu0 0.0
    %123 = vmatpush1.msra.mxu0 %v99
    %124 = vmatprep.subr.mxu0 0.0
    %125 = vmatpush1.msra.mxu0 0.0
    %126 = vmatprep.subr.mxu0 0.0
    %127 = vmatpush1.msra.mxu0 0.0
    %128 = vmatprep.subr.mxu0 0.0
    %129 = vmatpush1.msra.mxu0 0.0
    %130 = vmatprep.subr.mxu0 0.0
    %131 = vmatpush1.msra.mxu0 0.0
    %132 = vmatprep.subr.mxu0 0.0
    %133 = vmatpush1.msra.mxu0 0.0
    %134 = vmatprep.subr.mxu0 0.0
    %135 = vmatpush1.msra.mxu0 0.0
    %136 = vmatprep.subr.mxu0 0.0
    %137 = vmatpush1.msra.mxu0 0.0
    %138 = vmatprep.subr.mxu0 0.0
    %139 = vmatpush1.msra.mxu0 0.0
    %140 = vmatprep.subr.mxu0 0.0
    %141 = vmatpush1.msra.mxu0 0.0
    %142 = vmatprep.subr.mxu0 0.0
    %143 = vmatpush1.msra.mxu0 0.0
    %144 = vmatprep.subr.mxu0 0.0
    %145 = vmatpush1.msra.mxu0 0.0
    %146 = vmatprep.subr.mxu0 0.0
    %147 = vmatpush1.msra.mxu0 0.0
    %148 = vmatprep.subr.mxu0 0.0
    %149 = vmatpush1.msra.mxu0 0.0
    %150 = vmatprep.subr.mxu0 0.0
    %151 = vmatpush1.msra.mxu0 0.0
    %152 = vmatprep.subr.mxu0 0.0
    %153 = vmatpush1.msra.mxu0 0.0
    %154 = vmatprep.subr.mxu0 0.0
    %155 = vmatpush1.msra.mxu0 0.0
    %156 = vmatprep.subr.mxu0 0.0
    %157 = vmatpush1.msra.mxu0 0.0
    %158 = vmatprep.subr.mxu0 0.0
    %159 = vmatpush1.msra.mxu0 0.0
    %160 = vmatprep.subr.mxu0 0.0
    %161 = vmatpush1.msra.mxu0 0.0
    %162 = vmatprep.subr.mxu0 0.0
    %163 = vmatpush1.msra.mxu0 0.0
    %164 = vmatprep.subr.mxu0 0.0
    %165 = vmatpush1.msra.mxu0 0.0
    %166 = vmatprep.subr.mxu0 0.0
    %167 = vmatpush1.msra.mxu0 0.0
    %168 = vmatprep.subr.mxu0 0.0
    %169 = vmatpush1.msra.mxu0 0.0
    %170 = vmatprep.subr.mxu0 0.0
    %171 = vmatpush1.msra.mxu0 0.0
    %172 = vmatprep.mubr.f32.mxu0 0.0
    %173 = vmatmul.mubr.f32.gmra.mrb[0].mxu0 %v103
    %v174 = vpop.f32.mrb[0].mxu0
    %v175 = vadd.f32 %v100, %v174
    %v176 = vpop.f32.mrb[0].mxu0
    %177 = vmatprep.mubr.f32.mxu0 0.0
    %178 = vmatmul.mubr.f32.gmra.mrb[0].mxu0 %v106
    %v179 = vpop.f32.mrb[0].mxu0
    %v180 = vadd.f32 %v100, %v179
    %v181 = vpop.f32.mrb[0].mxu0
    %182 = vdwg.mxu0
    %v183 = vld [vmem:[%s1] sm:$0xff]
    %v184 = vld [vmem:[%s1 + $0x8] sm:$0xff]
    %v185 = vld [vmem:[%s1 + $0x10] sm:$0xff]
    %v186 = vld [vmem:[%s1 + $0x18] sm:$0xff]
    %v187 = vld [vmem:[%s4] sm:$0x1]
    %v188 = vld [vmem:[%s5] sm:$0x1]
    %vm189 = vcmask 261120
    %v190 = vsel %vm189, %v175, 0.0
    %191 = vadd.xlane.f32.xlu0 %v190
    %v192 = vpop.xlane.xlu0 %191
    %v193 = vsel %vm189, %v180, 0.0
    %194 = vadd.xlane.f32.xlu0 %v193
    %v195 = vpop.xlane.xlu0 %194
    %v196 = vrcp.pop 32.0
    %v197 = vmul.f32 %v192, %v196
    %v198 = vmul.f32 %v195, %v196
    %v199 = vsub.f32 %v175, %v197
    %v200 = vsub.f32 %v180, %v198
    %v201 = vmul.f32 %v199, %v199
    %v202 = vmul.f32 %v200, %v200
    %v203 = vsel %vm189, %v201, 0.0
    %204 = vadd.xlane.f32.xlu0 %v203
    %v205 = vpop.xlane.xlu0 %204
    %v206 = vsel %vm189, %v202, 0.0
    %207 = vadd.xlane.f32.xlu0 %v206
    %v208 = vpop.xlane.xlu0 %207
    %v209 = vmul.f32 %v205, %v196
    %v210 = vmul.f32 %v208, %v196
    %v211 = vadd.f32 %v209, 1e-05
    %v212 = vadd.f32 %v210, 1e-05
    %v213 = vrsqrt.pop %v211
    %v214 = vrsqrt.pop %v212
    %v215 = vmul.f32 %v199, %v213
    %v216 = vmul.f32 %v200, %v214
    %v218 = vlaneseq
    %v219 = vshrl.u32 %v218, 7
    %v220 = vsub.s32 0, %v219
    %v221 = vrot.slane %v187, %v220
    %v223 = vmul.f32 %v215, %v221
    %v224 = vmul.f32 %v216, %v221
    %v226 = vlaneseq
    %v227 = vshrl.u32 %v226, 7
    %v228 = vsub.s32 0, %v227
    %v229 = vrot.slane %v188, %v228
    %v231 = vadd.f32 %v223, %v229
    %v232 = vadd.f32 %v224, %v229
    %v233 = vpack.c.bf16 %v232, %v231
    %v234 = vld [vmem:[%s6] sm:$0xf]
    %v235 = vld [vmem:[%s6 + $0x4] sm:$0xf]
    %v236 = vld [vmem:[%s6 + $0x8] sm:$0xf]
    %v237 = vld [vmem:[%s6 + $0xc] sm:$0xf]
    %v238 = vld [vmem:[%s7] sm:$0x1]
    %v240 = vlaneseq
    %v241 = vshrl.u32 %v240, 7
    %v242 = vsub.s32 0, %v241
    %v243 = vrot.slane %v238, %v242
    %v249 = vunpack.c.l.b16 %v234
    %v250 = vunpack.c.l.b16 %v235
    %v251 = vunpack.c.l.b16 %v236
    %v252 = vunpack.c.l.b16 %v237
    %v253 = vpack.c.b16 %v250, %v249
    %v254 = vpack.c.b16 %v252, %v251
    %v258 = vsel %vm189, %v233, 0
    %260 = vmatprep.subr.bf16.mxu0 0
    %261 = vmatpush1.bf16.msra.mxu0 %v253
    %262 = vmatprep.subr.bf16.mxu0 0
    %263 = vmatpush1.bf16.msra.mxu0 %v254
    %264 = vmatprep.subr.bf16.mxu0 0
    %265 = vmatpush1.bf16.msra.mxu0 0
    %266 = vmatprep.subr.bf16.mxu0 0
    %267 = vmatpush1.bf16.msra.mxu0 0
    %268 = vmatprep.subr.bf16.mxu0 0
    %269 = vmatpush1.bf16.msra.mxu0 0
    %270 = vmatprep.subr.bf16.mxu0 0
    %271 = vmatpush1.bf16.msra.mxu0 0
    %272 = vmatprep.subr.bf16.mxu0 0
    %273 = vmatpush1.bf16.msra.mxu0 0
    %274 = vmatprep.subr.bf16.mxu0 0
    %275 = vmatpush1.bf16.msra.mxu0 0
    %276 = vmatprep.subr.bf16.mxu0 0
    %277 = vmatpush1.bf16.msra.mxu0 0
    %278 = vmatprep.subr.bf16.mxu0 0
    %279 = vmatpush1.bf16.msra.mxu0 0
    %280 = vmatprep.subr.bf16.mxu0 0
    %281 = vmatpush1.bf16.msra.mxu0 0
    %282 = vmatprep.subr.bf16.mxu0 0
    %283 = vmatpush1.bf16.msra.mxu0 0
    %284 = vmatprep.subr.bf16.mxu0 0
    %285 = vmatpush1.bf16.msra.mxu0 0
    %286 = vmatprep.subr.bf16.mxu0 0
    %287 = vmatpush1.bf16.msra.mxu0 0
    %288 = vmatprep.subr.bf16.mxu0 0
    %289 = vmatpush1.bf16.msra.mxu0 0
    %290 = vmatprep.subr.bf16.mxu0 0
    %291 = vmatpush1.bf16.msra.mxu0 0
    %292 = vmatprep.mubr.bf16.mxu0 0
    %293 = vmatmul.mubr.bf16.gmra.mrb[0].mxu0 %v258
    %v294 = vpop.f32.mrb[0].mxu0
    %v295 = vadd.f32 %v243, %v294
    %v296 = vpop.f32.mrb[0].mxu0
    %v297 = vpop.f32.mrb[0].mxu0
    %v298 = vadd.f32 %v243, %v297
    %v299 = vpop.f32.mrb[0].mxu0
    %300 = vdwg.mxu0
    %v301 = vld [vmem:[%s8] sm:$0xf]
    %v302 = vld [vmem:[%s8 + $0x4] sm:$0xf]
    %v303 = vld [vmem:[%s8 + $0x8] sm:$0xf]
    %v304 = vld [vmem:[%s8 + $0xc] sm:$0xf]
    %v305 = vld [vmem:[%s9] sm:$0x1]
    %v307 = vlaneseq
    %v308 = vshrl.u32 %v307, 7
    %v309 = vsub.s32 0, %v308
    %v310 = vrot.slane %v305, %v309
    %v316 = vunpack.c.l.b16 %v301
    %v317 = vunpack.c.l.b16 %v302
    %v318 = vunpack.c.l.b16 %v303
    %v319 = vunpack.c.l.b16 %v304
    %v320 = vpack.c.b16 %v317, %v316
    %v321 = vpack.c.b16 %v319, %v318
    %324 = vmatprep.subr.bf16.mxu0 0
    %325 = vmatpush1.bf16.msra.mxu0 %v320
    %326 = vmatprep.subr.bf16.mxu0 0
    %327 = vmatpush1.bf16.msra.mxu0 %v321
    %328 = vmatprep.subr.bf16.mxu0 0
    %329 = vmatpush1.bf16.msra.mxu0 0
    %330 = vmatprep.subr.bf16.mxu0 0
    %331 = vmatpush1.bf16.msra.mxu0 0
    %332 = vmatprep.subr.bf16.mxu0 0
    %333 = vmatpush1.bf16.msra.mxu0 0
    %334 = vmatprep.subr.bf16.mxu0 0
    %335 = vmatpush1.bf16.msra.mxu0 0
    %336 = vmatprep.subr.bf16.mxu0 0
    %337 = vmatpush1.bf16.msra.mxu0 0
    %338 = vmatprep.subr.bf16.mxu0 0
    %339 = vmatpush1.bf16.msra.mxu0 0
    %340 = vmatprep.subr.bf16.mxu0 0
    %341 = vmatpush1.bf16.msra.mxu0 0
    %342 = vmatprep.subr.bf16.mxu0 0
    %343 = vmatpush1.bf16.msra.mxu0 0
    %344 = vmatprep.subr.bf16.mxu0 0
    %345 = vmatpush1.bf16.msra.mxu0 0
    %346 = vmatprep.subr.bf16.mxu0 0
    %347 = vmatpush1.bf16.msra.mxu0 0
    %348 = vmatprep.subr.bf16.mxu0 0
    %349 = vmatpush1.bf16.msra.mxu0 0
    %350 = vmatprep.subr.bf16.mxu0 0
    %351 = vmatpush1.bf16.msra.mxu0 0
    %352 = vmatprep.subr.bf16.mxu0 0
    %353 = vmatpush1.bf16.msra.mxu0 0
    %354 = vmatprep.subr.bf16.mxu0 0
    %355 = vmatpush1.bf16.msra.mxu0 0
    %356 = vmatprep.mubr.bf16.mxu0 0
    %357 = vmatmul.mubr.bf16.gmra.mrb[0].mxu0 %v258
    %v358 = vpop.f32.mrb[0].mxu0
    %v359 = vadd.f32 %v310, %v358
    %v360 = vpop.f32.mrb[0].mxu0
    %v361 = vpop.f32.mrb[0].mxu0
    %v362 = vadd.f32 %v310, %v361
    %v363 = vpop.f32.mrb[0].mxu0
    %364 = vdwg.mxu0
    %v365 = vld [vmem:[%s10] sm:$0xf]
    %v366 = vld [vmem:[%s10 + $0x4] sm:$0xf]
    %v367 = vld [vmem:[%s10 + $0x8] sm:$0xf]
    %v368 = vld [vmem:[%s10 + $0xc] sm:$0xf]
    %v369 = vld [vmem:[%s11] sm:$0x1]
    %v371 = vlaneseq
    %v372 = vshrl.u32 %v371, 7
    %v373 = vsub.s32 0, %v372
    %v374 = vrot.slane %v369, %v373
    %v380 = vunpack.c.l.b16 %v365
    %v381 = vunpack.c.l.b16 %v366
    %v382 = vunpack.c.l.b16 %v367
    %v383 = vunpack.c.l.b16 %v368
    %v384 = vpack.c.b16 %v381, %v380
    %v385 = vpack.c.b16 %v383, %v382
    %388 = vmatprep.subr.bf16.mxu0 0
    %389 = vmatpush1.bf16.msra.mxu0 %v384
    %390 = vmatprep.subr.bf16.mxu0 0
    %391 = vmatpush1.bf16.msra.mxu0 %v385
    %392 = vmatprep.subr.bf16.mxu0 0
    %393 = vmatpush1.bf16.msra.mxu0 0
    %394 = vmatprep.subr.bf16.mxu0 0
    %395 = vmatpush1.bf16.msra.mxu0 0
    %396 = vmatprep.subr.bf16.mxu0 0
    %397 = vmatpush1.bf16.msra.mxu0 0
    %398 = vmatprep.subr.bf16.mxu0 0
    %399 = vmatpush1.bf16.msra.mxu0 0
    %400 = vmatprep.subr.bf16.mxu0 0
    %401 = vmatpush1.bf16.msra.mxu0 0
    %402 = vmatprep.subr.bf16.mxu0 0
    %403 = vmatpush1.bf16.msra.mxu0 0
    %404 = vmatprep.subr.bf16.mxu0 0
    %405 = vmatpush1.bf16.msra.mxu0 0
    %406 = vmatprep.subr.bf16.mxu0 0
    %407 = vmatpush1.bf16.msra.mxu0 0
    %408 = vmatprep.subr.bf16.mxu0 0
    %409 = vmatpush1.bf16.msra.mxu0 0
    %410 = vmatprep.subr.bf16.mxu0 0
    %411 = vmatpush1.bf16.msra.mxu0 0
    %412 = vmatprep.subr.bf16.mxu0 0
    %413 = vmatpush1.bf16.msra.mxu0 0
    %414 = vmatprep.subr.bf16.mxu0 0
    %415 = vmatpush1.bf16.msra.mxu0 0
    %416 = vmatprep.subr.bf16.mxu0 0
    %417 = vmatpush1.bf16.msra.mxu0 0
    %418 = vmatprep.subr.bf16.mxu0 0
    %419 = vmatpush1.bf16.msra.mxu0 0
    %420 = vmatprep.mubr.bf16.mxu0 0
    %421 = vmatmul.mubr.bf16.gmra.mrb[0].mxu0 %v258
    %v422 = vpop.f32.mrb[0].mxu0
    %v423 = vadd.f32 %v374, %v422
    %v424 = vpop.f32.mrb[0].mxu0
    %v425 = vpop.f32.mrb[0].mxu0
    %v426 = vadd.f32 %v374, %v425
    %v427 = vpop.f32.mrb[0].mxu0
    %428 = vdwg.mxu0
    %v429 = vmul.f32 %v295, %v183
    %v430 = vmul.f32 %v295, %v184
    %v431 = vmul.f32 %v295, %v185
    %v432 = vmul.f32 %v295, %v186
    %v433 = vmul.f32 %v298, %v183
    %v434 = vmul.f32 %v298, %v184
    %v435 = vmul.f32 %v298, %v185
    %v436 = vmul.f32 %v298, %v186
    %v437 = vpack.c.bf16 %v430, %v429
    %v438 = vpack.c.bf16 %v432, %v431
    %v439 = vpack.c.bf16 %v434, %v433
    %v440 = vpack.c.bf16 %v436, %v435
    %v441 = vpack.c.bf16 %v359, %v359
    %v442 = vpack.c.bf16 %v362, %v362
    %v444 = vsel %vm189, %v437, 0
    %v447 = vsel %vm189, %v438, 0
    %v450 = vsel %vm189, %v441, 0
    %452 = vmatprep.subr.bf16.mxu0 0
    %453 = vmatpush1.bf16.xpose.msra.mxu0 %v450
    %454 = vmatprep.subr.bf16.mxu0 0
    %455 = vmatpush1.bf16.xpose.msra.mxu0 0
    %456 = vmatprep.subr.bf16.mxu0 0
    %457 = vmatpush1.bf16.xpose.msra.mxu0 0
    %458 = vmatprep.subr.bf16.mxu0 0
    %459 = vmatpush1.bf16.xpose.msra.mxu0 0
    %460 = vmatprep.subr.bf16.mxu0 0
    %461 = vmatpush1.bf16.xpose.msra.mxu0 0
    %462 = vmatprep.subr.bf16.mxu0 0
    %463 = vmatpush1.bf16.xpose.msra.mxu0 0
    %464 = vmatprep.subr.bf16.mxu0 0
    %465 = vmatpush1.bf16.xpose.msra.mxu0 0
    %466 = vmatprep.subr.bf16.mxu0 0
    %467 = vmatpush1.bf16.xpose.msra.mxu0 0
    %468 = vmatprep.subr.bf16.mxu0 0
    %469 = vmatpush1.bf16.xpose.msra.mxu0 0
    %470 = vmatprep.subr.bf16.mxu0 0
    %471 = vmatpush1.bf16.xpose.msra.mxu0 0
    %472 = vmatprep.subr.bf16.mxu0 0
    %473 = vmatpush1.bf16.xpose.msra.mxu0 0
    %474 = vmatprep.subr.bf16.mxu0 0
    %475 = vmatpush1.bf16.xpose.msra.mxu0 0
    %476 = vmatprep.subr.bf16.mxu0 0
    %477 = vmatpush1.bf16.xpose.msra.mxu0 0
    %478 = vmatprep.subr.bf16.mxu0 0
    %479 = vmatpush1.bf16.xpose.msra.mxu0 0
    %480 = vmatprep.subr.bf16.mxu0 0
    %481 = vmatpush1.bf16.xpose.msra.mxu0 0
    %482 = vmatprep.subr.bf16.mxu0 0
    %483 = vmatpush1.bf16.xpose.msra.mxu0 0
    %484 = vmatprep.mubr.bf16.mxu0 0
    %485 = vmatmul.mubr.bf16.gmra.mrb[0].mxu0 %v444
    %v486 = vpop.f32.mrb[0].mxu0
    %v487 = vadd.f32 0.0, %v486
    %v488 = vpop.f32.mrb[0].mxu0
    %v489 = vpop.f32.mrb[0].mxu0
    %v490 = vadd.f32 0.0, %v489
    %v491 = vpop.f32.mrb[0].mxu0
    %492 = vmatprep.mubr.bf16.mxu0 0
    %493 = vmatmul.mubr.bf16.gmra.mrb[0].mxu0 %v447
    %v494 = vpop.f32.mrb[0].mxu0
    %v495 = vadd.f32 0.0, %v494
    %v496 = vpop.f32.mrb[0].mxu0
    %v497 = vpop.f32.mrb[0].mxu0
    %v498 = vadd.f32 0.0, %v497
    %v499 = vpop.f32.mrb[0].mxu0
    %500 = vdwg.mxu0
    %v502 = vsel %vm189, %v439, 0
    %v505 = vsel %vm189, %v440, 0
    %v508 = vsel %vm189, %v442, 0
    %510 = vmatprep.subr.bf16.mxu0 0
    %511 = vmatpush1.bf16.xpose.msra.mxu0 %v508
    %512 = vmatprep.subr.bf16.mxu0 0
    %513 = vmatpush1.bf16.xpose.msra.mxu0 0
    %514 = vmatprep.subr.bf16.mxu0 0
    %515 = vmatpush1.bf16.xpose.msra.mxu0 0
    %516 = vmatprep.subr.bf16.mxu0 0
    %517 = vmatpush1.bf16.xpose.msra.mxu0 0
    %518 = vmatprep.subr.bf16.mxu0 0
    %519 = vmatpush1.bf16.xpose.msra.mxu0 0
    %520 = vmatprep.subr.bf16.mxu0 0
    %521 = vmatpush1.bf16.xpose.msra.mxu0 0
    %522 = vmatprep.subr.bf16.mxu0 0
    %523 = vmatpush1.bf16.xpose.msra.mxu0 0
    %524 = vmatprep.subr.bf16.mxu0 0
    %525 = vmatpush1.bf16.xpose.msra.mxu0 0
    %526 = vmatprep.subr.bf16.mxu0 0
    %527 = vmatpush1.bf16.xpose.msra.mxu0 0
    %528 = vmatprep.subr.bf16.mxu0 0
    %529 = vmatpush1.bf16.xpose.msra.mxu0 0
    %530 = vmatprep.subr.bf16.mxu0 0
    %531 = vmatpush1.bf16.xpose.msra.mxu0 0
    %532 = vmatprep.subr.bf16.mxu0 0
    %533 = vmatpush1.bf16.xpose.msra.mxu0 0
    %534 = vmatprep.subr.bf16.mxu0 0
    %535 = vmatpush1.bf16.xpose.msra.mxu0 0
    %536 = vmatprep.subr.bf16.mxu0 0
    %537 = vmatpush1.bf16.xpose.msra.mxu0 0
    %538 = vmatprep.subr.bf16.mxu0 0
    %539 = vmatpush1.bf16.xpose.msra.mxu0 0
    %540 = vmatprep.subr.bf16.mxu0 0
    %541 = vmatpush1.bf16.xpose.msra.mxu0 0
    %542 = vmatprep.mubr.bf16.mxu0 0
    %543 = vmatmul.mubr.bf16.gmra.mrb[0].mxu0 %v502
    %v544 = vpop.f32.mrb[0].mxu0
    %v545 = vadd.f32 0.0, %v544
    %v546 = vpop.f32.mrb[0].mxu0
    %v547 = vpop.f32.mrb[0].mxu0
    %v548 = vadd.f32 0.0, %v547
    %v549 = vpop.f32.mrb[0].mxu0
    %550 = vmatprep.mubr.bf16.mxu0 0
    %551 = vmatmul.mubr.bf16.gmra.mrb[0].mxu0 %v505
    %v552 = vpop.f32.mrb[0].mxu0
    %v553 = vadd.f32 0.0, %v552
    %v554 = vpop.f32.mrb[0].mxu0
    %v555 = vpop.f32.mrb[0].mxu0
    %v556 = vadd.f32 0.0, %v555
    %v557 = vpop.f32.mrb[0].mxu0
    %558 = vdwg.mxu0
    %v559 = vmul.f32 %v487, 0.35355338
    %v560 = vmul.f32 %v490, 0.35355338
    %v561 = vmul.f32 %v495, 0.35355338
    %v562 = vmul.f32 %v498, 0.35355338
    %v563 = vmul.f32 %v545, 0.35355338
    %v564 = vmul.f32 %v548, 0.35355338
    %v565 = vmul.f32 %v553, 0.35355338
    %v566 = vmul.f32 %v556, 0.35355338
    %vm567 = vcmask 64512
    %v568 = vsel %vm567, %v559, -inf
    %569 = vmax.xlane.f32.xlu0 %v568
    %v570 = vpop.xlane.xlu0 %569
    %v571 = vsel %vm567, %v560, -inf
    %572 = vmax.xlane.f32.xlu0 %v571
    %v573 = vpop.xlane.xlu0 %572
    %v574 = vsel %vm567, %v561, -inf
    %575 = vmax.xlane.f32.xlu0 %v574
    %v576 = vpop.xlane.xlu0 %575
    %v577 = vsel %vm567, %v562, -inf
    %578 = vmax.xlane.f32.xlu0 %v577
    %v579 = vpop.xlane.xlu0 %578
    %v580 = vsel %vm567, %v563, -inf
    %581 = vmax.xlane.f32.xlu0 %v580
    %v582 = vpop.xlane.xlu0 %581
    %v583 = vsel %vm567, %v564, -inf
    %584 = vmax.xlane.f32.xlu0 %v583
    %v585 = vpop.xlane.xlu0 %584
    %v586 = vsel %vm567, %v565, -inf
    %587 = vmax.xlane.f32.xlu0 %v586
    %v588 = vpop.xlane.xlu0 %587
    %v589 = vsel %vm567, %v566, -inf
    %590 = vmax.xlane.f32.xlu0 %v589
    %v591 = vpop.xlane.xlu0 %590
    %v592 = vsub.f32 %v559, %v570
    %v593 = vsub.f32 %v560, %v573
    %v594 = vsub.f32 %v561, %v576
    %v595 = vsub.f32 %v562, %v579
    %v596 = vsub.f32 %v563, %v582
    %v597 = vsub.f32 %v564, %v585
    %v598 = vsub.f32 %v565, %v588
    %v599 = vsub.f32 %v566, %v591
    %v600 = vmul.f32 %v592, 1.442695
    %v601 = vpow.pop %v600
    %v602 = vmul.f32 %v593, 1.442695
    %v603 = vpow.pop %v602
    %v604 = vmul.f32 %v594, 1.442695
    %v605 = vpow.pop %v604
    %v606 = vmul.f32 %v595, 1.442695
    %v607 = vpow.pop %v606
    %v608 = vmul.f32 %v596, 1.442695
    %v609 = vpow.pop %v608
    %v610 = vmul.f32 %v597, 1.442695
    %v611 = vpow.pop %v610
    %v612 = vmul.f32 %v598, 1.442695
    %v613 = vpow.pop %v612
    %v614 = vmul.f32 %v599, 1.442695
    %v615 = vpow.pop %v614
    %v616 = vsel %vm567, %v601, 0.0
    %617 = vadd.xlane.f32.xlu0 %v616
    %v618 = vpop.xlane.xlu0 %617
    %v619 = vsel %vm567, %v603, 0.0
    %620 = vadd.xlane.f32.xlu0 %v619
    %v621 = vpop.xlane.xlu0 %620
    %v622 = vsel %vm567, %v605, 0.0
    %623 = vadd.xlane.f32.xlu0 %v622
    %v624 = vpop.xlane.xlu0 %623
    %v625 = vsel %vm567, %v607, 0.0
    %626 = vadd.xlane.f32.xlu0 %v625
    %v627 = vpop.xlane.xlu0 %626
    %v628 = vsel %vm567, %v609, 0.0
    %629 = vadd.xlane.f32.xlu0 %v628
    %v630 = vpop.xlane.xlu0 %629
    %v631 = vsel %vm567, %v611, 0.0
    %632 = vadd.xlane.f32.xlu0 %v631
    %v633 = vpop.xlane.xlu0 %632
    %v634 = vsel %vm567, %v613, 0.0
    %635 = vadd.xlane.f32.xlu0 %v634
    %v636 = vpop.xlane.xlu0 %635
    %v637 = vsel %vm567, %v615, 0.0
    %638 = vadd.xlane.f32.xlu0 %v637
    %v639 = vpop.xlane.xlu0 %638
    %v640 = vrcp.pop %v618
    %v641 = vrcp.pop %v621
    %v642 = vrcp.pop %v624
    %v643 = vrcp.pop %v627
    %v644 = vrcp.pop %v630
    %v645 = vrcp.pop %v633
    %v646 = vrcp.pop %v636
    %v647 = vrcp.pop %v639
    %v648 = vmul.f32 %v601, %v640
    %v649 = vmul.f32 %v603, %v641
    %v650 = vmul.f32 %v605, %v642
    %v651 = vmul.f32 %v607, %v643
    %v652 = vmul.f32 %v609, %v644
    %v653 = vmul.f32 %v611, %v645
    %v654 = vmul.f32 %v613, %v646
    %v655 = vmul.f32 %v615, %v647
    %656 = vst.msk [vmem:[#allocation4] sm:$0xff] %vm567, %v648
    %657 = vst.msk [vmem:[#allocation4 + $0x8] sm:$0xff] %vm567, %v649
    %658 = vst.msk [vmem:[#allocation4 + $0x10] sm:$0xff] %vm567, %v650
    %659 = vst.msk [vmem:[#allocation4 + $0x18] sm:$0xff] %vm567, %v651
    %660 = vst.msk [vmem:[#allocation4 + $0x20] sm:$0xff] %vm567, %v652
    %661 = vst.msk [vmem:[#allocation4 + $0x28] sm:$0xff] %vm567, %v653
    %662 = vst.msk [vmem:[#allocation4 + $0x30] sm:$0xff] %vm567, %v654
    %663 = vst.msk [vmem:[#allocation4 + $0x38] sm:$0xff] %vm567, %v655
    %v664 = vpack.c.bf16 %v649, %v648
    %v665 = vpack.c.bf16 %v651, %v650
    %v666 = vpack.c.bf16 %v653, %v652
    %v667 = vpack.c.bf16 %v655, %v654
    %v668 = vpack.c.bf16 %v423, %v423
    %v669 = vpack.c.bf16 %v426, %v426
    %v671 = vsel %vm567, %v664, 0
    %v674 = vsel %vm567, %v665, 0
    %vm676 = vcmask 1043456
    %v678 = vsel %vm676, %v668, 0
    %680 = vmatprep.subr.bf16.mxu0 0
    %681 = vmatpush1.bf16.msra.mxu0 %v678
    %682 = vmatprep.subr.bf16.mxu0 0
    %683 = vmatpush1.bf16.msra.mxu0 0
    %684 = vmatprep.subr.bf16.mxu0 0
    %685 = vmatpush1.bf16.msra.mxu0 0
    %686 = vmatprep.subr.bf16.mxu0 0
    %687 = vmatpush1.bf16.msra.mxu0 0
    %688 = vmatprep.subr.bf16.mxu0 0
    %689 = vmatpush1.bf16.msra.mxu0 0
    %690 = vmatprep.subr.bf16.mxu0 0
    %691 = vmatpush1.bf16.msra.mxu0 0
    %692 = vmatprep.subr.bf16.mxu0 0
    %693 = vmatpush1.bf16.msra.mxu0 0
    %694 = vmatprep.subr.bf16.mxu0 0
    %695 = vmatpush1.bf16.msra.mxu0 0
    %696 = vmatprep.subr.bf16.mxu0 0
    %697 = vmatpush1.bf16.msra.mxu0 0
    %698 = vmatprep.subr.bf16.mxu0 0
    %699 = vmatpush1.bf16.msra.mxu0 0
    %700 = vmatprep.subr.bf16.mxu0 0
    %701 = vmatpush1.bf16.msra.mxu0 0
    %702 = vmatprep.subr.bf16.mxu0 0
    %703 = vmatpush1.bf16.msra.mxu0 0
    %704 = vmatprep.subr.bf16.mxu0 0
    %705 = vmatpush1.bf16.msra.mxu0 0
    %706 = vmatprep.subr.bf16.mxu0 0
    %707 = vmatpush1.bf16.msra.mxu0 0
    %708 = vmatprep.subr.bf16.mxu0 0
    %709 = vmatpush1.bf16.msra.mxu0 0
    %710 = vmatprep.subr.bf16.mxu0 0
    %711 = vmatpush1.bf16.msra.mxu0 0
    %712 = vmatprep.mubr.bf16.mxu0 0
    %713 = vmatmul.mubr.bf16.gmra.mrb[0].mxu0 %v671
    %v714 = vpop.f32.mrb[0].mxu0
    %v715 = vadd.f32 0.0, %v714
    %v716 = vpop.f32.mrb[0].mxu0
    %v717 = vpop.f32.mrb[0].mxu0
    %v718 = vadd.f32 0.0, %v717
    %v719 = vpop.f32.mrb[0].mxu0
    %720 = vmatprep.mubr.bf16.mxu0 0
    %721 = vmatmul.mubr.bf16.gmra.mrb[0].mxu0 %v674
    %v722 = vpop.f32.mrb[0].mxu0
    %v723 = vadd.f32 0.0, %v722
    %v724 = vpop.f32.mrb[0].mxu0
    %v725 = vpop.f32.mrb[0].mxu0
    %v726 = vadd.f32 0.0, %v725
    %v727 = vpop.f32.mrb[0].mxu0
    %728 = vdwg.mxu0
    %v730 = vsel %vm567, %v666, 0
    %v733 = vsel %vm567, %v667, 0
    %v736 = vsel %vm676, %v669, 0
    %738 = vmatprep.subr.bf16.mxu0 0
    %739 = vmatpush1.bf16.msra.mxu0 %v736
    %740 = vmatprep.subr.bf16.mxu0 0
    %741 = vmatpush1.bf16.msra.mxu0 0
    %742 = vmatprep.subr.bf16.mxu0 0
    %743 = vmatpush1.bf16.msra.mxu0 0
    %744 = vmatprep.subr.bf16.mxu0 0
    %745 = vmatpush1.bf16.msra.mxu0 0
    %746 = vmatprep.subr.bf16.mxu0 0
    %747 = vmatpush1.bf16.msra.mxu0 0
    %748 = vmatprep.subr.bf16.mxu0 0
    %749 = vmatpush1.bf16.msra.mxu0 0
    %750 = vmatprep.subr.bf16.mxu0 0
    %751 = vmatpush1.bf16.msra.mxu0 0
    %752 = vmatprep.subr.bf16.mxu0 0
    %753 = vmatpush1.bf16.msra.mxu0 0
    %754 = vmatprep.subr.bf16.mxu0 0
    %755 = vmatpush1.bf16.msra.mxu0 0
    %756 = vmatprep.subr.bf16.mxu0 0
    %757 = vmatpush1.bf16.msra.mxu0 0
    %758 = vmatprep.subr.bf16.mxu0 0
    %759 = vmatpush1.bf16.msra.mxu0 0
    %760 = vmatprep.subr.bf16.mxu0 0
    %761 = vmatpush1.bf16.msra.mxu0 0
    %762 = vmatprep.subr.bf16.mxu0 0
    %763 = vmatpush1.bf16.msra.mxu0 0
    %764 = vmatprep.subr.bf16.mxu0 0
    %765 = vmatpush1.bf16.msra.mxu0 0
    %766 = vmatprep.subr.bf16.mxu0 0
    %767 = vmatpush1.bf16.msra.mxu0 0
    %768 = vmatprep.subr.bf16.mxu0 0
    %769 = vmatpush1.bf16.msra.mxu0 0
    %770 = vmatprep.mubr.bf16.mxu0 0
    %771 = vmatmul.mubr.bf16.gmra.mrb[0].mxu0 %v730
    %v772 = vpop.f32.mrb[0].mxu0
    %v773 = vadd.f32 0.0, %v772
    %v774 = vpop.f32.mrb[0].mxu0
    %v775 = vpop.f32.mrb[0].mxu0
    %v776 = vadd.f32 0.0, %v775
    %v777 = vpop.f32.mrb[0].mxu0
    %778 = vmatprep.mubr.bf16.mxu0 0
    %779 = vmatmul.mubr.bf16.gmra.mrb[0].mxu0 %v733
    %v780 = vpop.f32.mrb[0].mxu0
    %v781 = vadd.f32 0.0, %v780
    %v782 = vpop.f32.mrb[0].mxu0
    %v783 = vpop.f32.mrb[0].mxu0
    %v784 = vadd.f32 0.0, %v783
    %v785 = vpop.f32.mrb[0].mxu0
    %786 = vdwg.mxu0
    %v787 = vmul.f32 %v715, %v183
    %v788 = vmul.f32 %v718, %v184
    %v789 = vmul.f32 %v723, %v185
    %v790 = vmul.f32 %v726, %v186
    %v791 = vmul.f32 %v773, %v183
    %v792 = vmul.f32 %v776, %v184
    %v793 = vmul.f32 %v781, %v185
    %v794 = vmul.f32 %v784, %v186
    %v795 = vadd.f32 %v787, %v788
    %v796 = vadd.f32 %v791, %v792
    %v797 = vadd.f32 %v795, %v789
    %v798 = vadd.f32 %v796, %v793
    %v799 = vadd.f32 %v797, %v790
    %v800 = vadd.f32 %v798, %v794
    %v801 = vpack.c.bf16 %v800, %v799
    %v802 = vld [vmem:[%s12] sm:$0xf]
    %v803 = vld [vmem:[%s12 + $0x4] sm:$0xf]
    %v804 = vld [vmem:[%s12 + $0x8] sm:$0xf]
    %v805 = vld [vmem:[%s12 + $0xc] sm:$0xf]
    %v806 = vld [vmem:[%s13] sm:$0x1]
    %v808 = vlaneseq
    %v809 = vshrl.u32 %v808, 7
    %v810 = vsub.s32 0, %v809
    %v811 = vrot.slane %v806, %v810
    %v817 = vunpack.c.l.b16 %v802
    %v818 = vunpack.c.l.b16 %v803
    %v819 = vunpack.c.l.b16 %v804
    %v820 = vunpack.c.l.b16 %v805
    %v821 = vpack.c.b16 %v818, %v817
    %v822 = vpack.c.b16 %v820, %v819
    %v826 = vsel %vm189, %v801, 0
    %828 = vmatprep.subr.bf16.mxu0 0
    %829 = vmatpush1.bf16.msra.mxu0 %v821
    %830 = vmatprep.subr.bf16.mxu0 0
    %831 = vmatpush1.bf16.msra.mxu0 %v822
    %832 = vmatprep.subr.bf16.mxu0 0
    %833 = vmatpush1.bf16.msra.mxu0 0
    %834 = vmatprep.subr.bf16.mxu0 0
    %835 = vmatpush1.bf16.msra.mxu0 0
    %836 = vmatprep.subr.bf16.mxu0 0
    %837 = vmatpush1.bf16.msra.mxu0 0
    %838 = vmatprep.subr.bf16.mxu0 0
    %839 = vmatpush1.bf16.msra.mxu0 0
    %840 = vmatprep.subr.bf16.mxu0 0
    %841 = vmatpush1.bf16.msra.mxu0 0
    %842 = vmatprep.subr.bf16.mxu0 0
    %843 = vmatpush1.bf16.msra.mxu0 0
    %844 = vmatprep.subr.bf16.mxu0 0
    %845 = vmatpush1.bf16.msra.mxu0 0
    %846 = vmatprep.subr.bf16.mxu0 0
    %847 = vmatpush1.bf16.msra.mxu0 0
    %848 = vmatprep.subr.bf16.mxu0 0
    %849 = vmatpush1.bf16.msra.mxu0 0
    %850 = vmatprep.subr.bf16.mxu0 0
    %851 = vmatpush1.bf16.msra.mxu0 0
    %852 = vmatprep.subr.bf16.mxu0 0
    %853 = vmatpush1.bf16.msra.mxu0 0
    %854 = vmatprep.subr.bf16.mxu0 0
    %855 = vmatpush1.bf16.msra.mxu0 0
    %856 = vmatprep.subr.bf16.mxu0 0
    %857 = vmatpush1.bf16.msra.mxu0 0
    %858 = vmatprep.subr.bf16.mxu0 0
    %859 = vmatpush1.bf16.msra.mxu0 0
    %860 = vmatprep.mubr.bf16.mxu0 0
    %861 = vmatmul.mubr.bf16.gmra.mrb[0].mxu0 %v826
    %v862 = vpop.f32.mrb[0].mxu0
    %v863 = vadd.f32 %v811, %v862
    %v864 = vpop.f32.mrb[0].mxu0
    %v865 = vpop.f32.mrb[0].mxu0
    %v866 = vadd.f32 %v811, %v865
    %v867 = vpop.f32.mrb[0].mxu0
    %868 = vdwg.mxu0
    %v869 = vadd.f32 %v175, %v863
    %v870 = vadd.f32 %v180, %v866
    %v871 = vld [vmem:[%s14] sm:$0x1]
    %v872 = vld [vmem:[%s15] sm:$0x1]
    %v873 = vsel %vm189, %v869, 0.0
    %874 = vadd.xlane.f32.xlu0 %v873
    %v875 = vpop.xlane.xlu0 %874
    %v876 = vsel %vm189, %v870, 0.0
    %877 = vadd.xlane.f32.xlu0 %v876
    %v878 = vpop.xlane.xlu0 %877
    %v879 = vmul.f32 %v875, %v196
    %v880 = vmul.f32 %v878, %v196
    %v881 = vsub.f32 %v869, %v879
    %v882 = vsub.f32 %v870, %v880
    %v883 = vmul.f32 %v881, %v881
    %v884 = vmul.f32 %v882, %v882
    %v885 = vsel %vm189, %v883, 0.0
    %886 = vadd.xlane.f32.xlu0 %v885
    %v887 = vpop.xlane.xlu0 %886
    %v888 = vsel %vm189, %v884, 0.0
    %889 = vadd.xlane.f32.xlu0 %v888
    %v890 = vpop.xlane.xlu0 %889
    %v891 = vmul.f32 %v887, %v196
    %v892 = vmul.f32 %v890, %v196
    %v893 = vadd.f32 %v891, 1e-05
    %v894 = vadd.f32 %v892, 1e-05
    %v895 = vrsqrt.pop %v893
    %v896 = vrsqrt.pop %v894
    %v897 = vmul.f32 %v881, %v895
    %v898 = vmul.f32 %v882, %v896
    %v900 = vlaneseq
    %v901 = vshrl.u32 %v900, 7
    %v902 = vsub.s32 0, %v901
    %v903 = vrot.slane %v871, %v902
    %v905 = vmul.f32 %v897, %v903
    %v906 = vmul.f32 %v898, %v903
    %v908 = vlaneseq
    %v909 = vshrl.u32 %v908, 7
    %v910 = vsub.s32 0, %v909
    %v911 = vrot.slane %v872, %v910
    %v913 = vadd.f32 %v905, %v911
    %v914 = vadd.f32 %v906, %v911
    %v915 = vpack.c.bf16 %v914, %v913
    %v916 = vld [vmem:[%s16] sm:$0xf]
    %v917 = vld [vmem:[%s16 + $0x4] sm:$0xf]
    %v918 = vld [vmem:[%s16 + $0x8] sm:$0xf]
    %v919 = vld [vmem:[%s16 + $0xc] sm:$0xf]
    %v920 = vld [vmem:[%s17] sm:$0x1]
    %v922 = vlaneseq
    %v923 = vshrl.u32 %v922, 7
    %v924 = vsub.s32 0, %v923
    %v925 = vrot.slane %v920, %v924
    %v931 = vunpack.c.l.b16 %v916
    %v932 = vunpack.c.l.b16 %v917
    %v933 = vunpack.c.l.b16 %v918
    %v934 = vunpack.c.l.b16 %v919
    %v935 = vpack.c.b16 %v932, %v931
    %v936 = vpack.c.b16 %v934, %v933
    %v940 = vsel %vm189, %v915, 0
    %942 = vmatprep.subr.bf16.mxu0 0
    %943 = vmatpush1.bf16.msra.mxu0 %v935
    %944 = vmatprep.subr.bf16.mxu0 0
    %945 = vmatpush1.bf16.msra.mxu0 %v936
    %946 = vmatprep.subr.bf16.mxu0 0
    %947 = vmatpush1.bf16.msra.mxu0 0
    %948 = vmatprep.subr.bf16.mxu0 0
    %949 = vmatpush1.bf16.msra.mxu0 0
    %950 = vmatprep.subr.bf16.mxu0 0
    %951 = vmatpush1.bf16.msra.mxu0 0
    %952 = vmatprep.subr.bf16.mxu0 0
    %953 = vmatpush1.bf16.msra.mxu0 0
    %954 = vmatprep.subr.bf16.mxu0 0
    %955 = vmatpush1.bf16.msra.mxu0 0
    %956 = vmatprep.subr.bf16.mxu0 0
    %957 = vmatpush1.bf16.msra.mxu0 0
    %958 = vmatprep.subr.bf16.mxu0 0
    %959 = vmatpush1.bf16.msra.mxu0 0
    %960 = vmatprep.subr.bf16.mxu0 0
    %961 = vmatpush1.bf16.msra.mxu0 0
    %962 = vmatprep.subr.bf16.mxu0 0
    %963 = vmatpush1.bf16.msra.mxu0 0
    %964 = vmatprep.subr.bf16.mxu0 0
    %965 = vmatpush1.bf16.msra.mxu0 0
    %966 = vmatprep.subr.bf16.mxu0 0
    %967 = vmatpush1.bf16.msra.mxu0 0
    %968 = vmatprep.subr.bf16.mxu0 0
    %969 = vmatpush1.bf16.msra.mxu0 0
    %970 = vmatprep.subr.bf16.mxu0 0
    %971 = vmatpush1.bf16.msra.mxu0 0
    %972 = vmatprep.subr.bf16.mxu0 0
    %973 = vmatpush1.bf16.msra.mxu0 0
    %974 = vmatprep.mubr.bf16.mxu0 0
    %975 = vmatmul.mubr.bf16.gmra.mrb[0].mxu0 %v940
    %v976 = vpop.f32.mrb[0].mxu0
    %v977 = vadd.f32 %v925, %v976
    %v978 = vpop.f32.mrb[0].mxu0
    %v979 = vpop.f32.mrb[0].mxu0
    %v980 = vadd.f32 %v925, %v979
    %v981 = vpop.f32.mrb[0].mxu0
    %982 = vdwg.mxu0
    %v983 = vmul.f32 %v977, %v977
    %v984 = vmul.f32 %v980, %v980
    %v985 = vmul.f32 %v977, %v983
    %v986 = vmul.f32 %v980, %v984
    %v987 = vmul.f32 %v985, 0.044715
    %v988 = vmul.f32 %v986, 0.044715
    %v989 = vadd.f32 %v977, %v987
    %v990 = vadd.f32 %v980, %v988
    %v991 = vmul.f32 %v989, 0.7978846
    %v992 = vmul.f32 %v990, 0.7978846
    %v993 = vtanh.pop %v991
    %v994 = vtanh.pop %v992
    %v995 = vadd.f32 %v993, 1.0
    %v996 = vadd.f32 %v994, 1.0
    %v997 = vmul.f32 %v995, 0.5
    %v998 = vmul.f32 %v996, 0.5
    %v999 = vmul.f32 %v977, %v997
    %v1000 = vmul.f32 %v980, %v998
    %v1001 = vpack.c.bf16 %v1000, %v999
    %v1002 = vld [vmem:[%s18] sm:$0xf]
    %v1003 = vld [vmem:[%s18 + $0x4] sm:$0xf]
    %v1004 = vld [vmem:[%s18 + $0x8] sm:$0xf]
    %v1005 = vld [vmem:[%s18 + $0xc] sm:$0xf]
    %v1006 = vld [vmem:[%s18 + $0x10] sm:$0xf]
    %v1007 = vld [vmem:[%s18 + $0x14] sm:$0xf]
    %v1008 = vld [vmem:[%s18 + $0x18] sm:$0xf]
    %v1009 = vld [vmem:[%s18 + $0x1c] sm:$0xf]
    %v1010 = vld [vmem:[%s18 + $0x20] sm:$0xf]
    %v1011 = vld [vmem:[%s18 + $0x24] sm:$0xf]
    %v1012 = vld [vmem:[%s18 + $0x28] sm:$0xf]
    %v1013 = vld [vmem:[%s18 + $0x2c] sm:$0xf]
    %v1014 = vld [vmem:[%s18 + $0x30] sm:$0xf]
    %v1015 = vld [vmem:[%s18 + $0x34] sm:$0xf]
    %v1016 = vld [vmem:[%s18 + $0x38] sm:$0xf]
    %v1017 = vld [vmem:[%s18 + $0x3c] sm:$0xf]
    %v1018 = vld [vmem:[%s19] sm:$0x1]
    %v1020 = vlaneseq
    %v1021 = vshrl.u32 %v1020, 7
    %v1022 = vsub.s32 0, %v1021
    %v1023 = vrot.slane %v1018, %v1022
    %v1041 = vunpack.c.l.b16 %v1002
    %v1042 = vunpack.c.l.b16 %v1003
    %v1043 = vunpack.c.l.b16 %v1004
    %v1044 = vunpack.c.l.b16 %v1005
    %v1045 = vunpack.c.l.b16 %v1006
    %v1046 = vunpack.c.l.b16 %v1007
    %v1047 = vunpack.c.l.b16 %v1008
    %v1048 = vunpack.c.l.b16 %v1009
    %v1049 = vunpack.c.l.b16 %v1010
    %v1050 = vunpack.c.l.b16 %v1011
    %v1051 = vunpack.c.l.b16 %v1012
    %v1052 = vunpack.c.l.b16 %v1013
    %v1053 = vunpack.c.l.b16 %v1014
    %v1054 = vunpack.c.l.b16 %v1015
    %v1055 = vunpack.c.l.b16 %v1016
    %v1056 = vunpack.c.l.b16 %v1017
    %v1057 = vpack.c.b16 %v1042, %v1041
    %v1058 = vpack.c.b16 %v1044, %v1043
    %v1059 = vpack.c.b16 %v1046, %v1045
    %v1060 = vpack.c.b16 %v1048, %v1047
    %v1061 = vpack.c.b16 %v1050, %v1049
    %v1062 = vpack.c.b16 %v1052, %v1051
    %v1063 = vpack.c.b16 %v1054, %v1053
    %v1064 = vpack.c.b16 %v1056, %v1055
    %1073 = vmatprep.subr.bf16.mxu0 0
    %1074 = vmatpush1.bf16.msra.mxu0 %v1057
    %1075 = vmatprep.subr.bf16.mxu0 0
    %1076 = vmatpush1.bf16.msra.mxu0 %v1058
    %1077 = vmatprep.subr.bf16.mxu0 0
    %1078 = vmatpush1.bf16.msra.mxu0 %v1059
    %1079 = vmatprep.subr.bf16.mxu0 0
    %1080 = vmatpush1.bf16.msra.mxu0 %v1060
    %1081 = vmatprep.subr.bf16.mxu0 0
    %1082 = vmatpush1.bf16.msra.mxu0 %v1061
    %1083 = vmatprep.subr.bf16.mxu0 0
    %1084 = vmatpush1.bf16.msra.mxu0 %v1062
    %1085 = vmatprep.subr.bf16.mxu0 0
    %1086 = vmatpush1.bf16.msra.mxu0 %v1063
    %1087 = vmatprep.subr.bf16.mxu0 0
    %1088 = vmatpush1.bf16.msra.mxu0 %v1064
    %1089 = vmatprep.subr.bf16.mxu0 0
    %1090 = vmatpush1.bf16.msra.mxu0 0
    %1091 = vmatprep.subr.bf16.mxu0 0
    %1092 = vmatpush1.bf16.msra.mxu0 0
    %1093 = vmatprep.subr.bf16.mxu0 0
    %1094 = vmatpush1.bf16.msra.mxu0 0
    %1095 = vmatprep.subr.bf16.mxu0 0
    %1096 = vmatpush1.bf16.msra.mxu0 0
    %1097 = vmatprep.subr.bf16.mxu0 0
    %1098 = vmatpush1.bf16.msra.mxu0 0
    %1099 = vmatprep.subr.bf16.mxu0 0
    %1100 = vmatpush1.bf16.msra.mxu0 0
    %1101 = vmatprep.subr.bf16.mxu0 0
    %1102 = vmatpush1.bf16.msra.mxu0 0
    %1103 = vmatprep.subr.bf16.mxu0 0
    %1104 = vmatpush1.bf16.msra.mxu0 0
    %1105 = vmatprep.mubr.bf16.mxu0 0
    %1106 = vmatmul.mubr.bf16.gmra.mrb[0].mxu0 %v1001
    %v1107 = vpop.f32.mrb[0].mxu0
    %v1108 = vadd.f32 %v1023, %v1107
    %v1109 = vpop.f32.mrb[0].mxu0
    %v1110 = vpop.f32.mrb[0].mxu0
    %v1111 = vadd.f32 %v1023, %v1110
    %v1112 = vpop.f32.mrb[0].mxu0
    %1113 = vdwg.mxu0
    %v1114 = vadd.f32 %v869, %v1108
    %v1115 = vadd.f32 %v870, %v1111
    %s1116 = scalar_lea.vmem %s4, 1
    %v1117 = vld [vmem:[%s1116] sm:$0x1]
    %s1118 = scalar_lea.vmem %s5, 1
    %v1119 = vld [vmem:[%s1118] sm:$0x1]
    %v1120 = vsel %vm189, %v1114, 0.0
    %1121 = vadd.xlane.f32.xlu0 %v1120
    %v1122 = vpop.xlane.xlu0 %1121
    %v1123 = vsel %vm189, %v1115, 0.0
    %1124 = vadd.xlane.f32.xlu0 %v1123
    %v1125 = vpop.xlane.xlu0 %1124
    %v1126 = vmul.f32 %v1122, %v196
    %v1127 = vmul.f32 %v1125, %v196
    %v1128 = vsub.f32 %v1114, %v1126
    %v1129 = vsub.f32 %v1115, %v1127
    %v1130 = vmul.f32 %v1128, %v1128
    %v1131 = vmul.f32 %v1129, %v1129
    %v1132 = vsel %vm189, %v1130, 0.0
    %1133 = vadd.xlane.f32.xlu0 %v1132
    %v1134 = vpop.xlane.xlu0 %1133
    %v1135 = vsel %vm189, %v1131, 0.0
    %1136 = vadd.xlane.f32.xlu0 %v1135
    %v1137 = vpop.xlane.xlu0 %1136
    %v1138 = vmul.f32 %v1134, %v196
    %v1139 = vmul.f32 %v1137, %v196
    %v1140 = vadd.f32 %v1138, 1e-05
    %v1141 = vadd.f32 %v1139, 1e-05
    %v1142 = vrsqrt.pop %v1140
    %v1143 = vrsqrt.pop %v1141
    %v1144 = vmul.f32 %v1128, %v1142
    %v1145 = vmul.f32 %v1129, %v1143
    %v1147 = vlaneseq
    %v1148 = vshrl.u32 %v1147, 7
    %v1149 = vsub.s32 0, %v1148
    %v1150 = vrot.slane %v1117, %v1149
    %v1152 = vmul.f32 %v1144, %v1150
    %v1153 = vmul.f32 %v1145, %v1150
    %v1155 = vlaneseq
    %v1156 = vshrl.u32 %v1155, 7
    %v1157 = vsub.s32 0, %v1156
    %v1158 = vrot.slane %v1119, %v1157
    %v1160 = vadd.f32 %v1152, %v1158
    %v1161 = vadd.f32 %v1153, %v1158
    %v1162 = vpack.c.bf16 %v1161, %v1160
    %s1163 = scalar_lea.vmem %s6, 16
    %v1164 = vld [vmem:[%s1163] sm:$0xf]
    %v1165 = vld [vmem:[%s1163 + $0x4] sm:$0xf]
    %v1166 = vld [vmem:[%s1163 + $0x8] sm:$0xf]
    %v1167 = vld [vmem:[%s1163 + $0xc] sm:$0xf]
    %s1168 = scalar_lea.vmem %s7, 1
    %v1169 = vld [vmem:[%s1168] sm:$0x1]
    %v1171 = vlaneseq
    %v1172 = vshrl.u32 %v1171, 7
    %v1173 = vsub.s32 0, %v1172
    %v1174 = vrot.slane %v1169, %v1173
    %v1180 = vunpack.c.l.b16 %v1164
    %v1181 = vunpack.c.l.b16 %v1165
    %v1182 = vunpack.c.l.b16 %v1166
    %v1183 = vunpack.c.l.b16 %v1167
    %v1184 = vpack.c.b16 %v1181, %v1180
    %v1185 = vpack.c.b16 %v1183, %v1182
    %v1189 = vsel %vm189, %v1162, 0
    %1191 = vmatprep.subr.bf16.mxu0 0
    %1192 = vmatpush1.bf16.msra.mxu0 %v1184
    %1193 = vmatprep.subr.bf16.mxu0 0
    %1194 = vmatpush1.bf16.msra.mxu0 %v1185
    %1195 = vmatprep.subr.bf16.mxu0 0
    %1196 = vmatpush1.bf16.msra.mxu0 0
    %1197 = vmatprep.subr.bf16.mxu0 0
    %1198 = vmatpush1.bf16.msra.mxu0 0
    %1199 = vmatprep.subr.bf16.mxu0 0
    %1200 = vmatpush1.bf16.msra.mxu0 0
    %1201 = vmatprep.subr.bf16.mxu0 0
    %1202 = vmatpush1.bf16.msra.mxu0 0
    %1203 = vmatprep.subr.bf16.mxu0 0
    %1204 = vmatpush1.bf16.msra.mxu0 0
    %1205 = vmatprep.subr.bf16.mxu0 0
    %1206 = vmatpush1.bf16.msra.mxu0 0
    %1207 = vmatprep.subr.bf16.mxu0 0
    %1208 = vmatpush1.bf16.msra.mxu0 0
    %1209 = vmatprep.subr.bf16.mxu0 0
    %1210 = vmatpush1.bf16.msra.mxu0 0
    %1211 = vmatprep.subr.bf16.mxu0 0
    %1212 = vmatpush1.bf16.msra.mxu0 0
    %1213 = vmatprep.subr.bf16.mxu0 0
    %1214 = vmatpush1.bf16.msra.mxu0 0
    %1215 = vmatprep.subr.bf16.mxu0 0
    %1216 = vmatpush1.bf16.msra.mxu0 0
    %1217 = vmatprep.subr.bf16.mxu0 0
    %1218 = vmatpush1.bf16.msra.mxu0 0
    %1219 = vmatprep.subr.bf16.mxu0 0
    %1220 = vmatpush1.bf16.msra.mxu0 0
    %1221 = vmatprep.subr.bf16.mxu0 0
    %1222 = vmatpush1.bf16.msra.mxu0 0
    %1223 = vmatprep.mubr.bf16.mxu0 0
    %1224 = vmatmul.mubr.bf16.gmra.mrb[0].mxu0 %v1189
    %v1225 = vpop.f32.mrb[0].mxu0
    %v1226 = vadd.f32 %v1174, %v1225
    %v1227 = vpop.f32.mrb[0].mxu0
    %v1228 = vpop.f32.mrb[0].mxu0
    %v1229 = vadd.f32 %v1174, %v1228
    %v1230 = vpop.f32.mrb[0].mxu0
    %1231 = vdwg.mxu0
    %s1232 = scalar_lea.vmem %s8, 16
    %v1233 = vld [vmem:[%s1232] sm:$0xf]
    %v1234 = vld [vmem:[%s1232 + $0x4] sm:$0xf]
    %v1235 = vld [vmem:[%s1232 + $0x8] sm:$0xf]
    %v1236 = vld [vmem:[%s1232 + $0xc] sm:$0xf]
    %s1237 = scalar_lea.vmem %s9, 1
    %v1238 = vld [vmem:[%s1237] sm:$0x1]
    %v1240 = vlaneseq
    %v1241 = vshrl.u32 %v1240, 7
    %v1242 = vsub.s32 0, %v1241
    %v1243 = vrot.slane %v1238, %v1242
    %v1249 = vunpack.c.l.b16 %v1233
    %v1250 = vunpack.c.l.b16 %v1234
    %v1251 = vunpack.c.l.b16 %v1235
    %v1252 = vunpack.c.l.b16 %v1236
    %v1253 = vpack.c.b16 %v1250, %v1249
    %v1254 = vpack.c.b16 %v1252, %v1251
    %1257 = vmatprep.subr.bf16.mxu0 0
    %1258 = vmatpush1.bf16.msra.mxu0 %v1253
    %1259 = vmatprep.subr.bf16.mxu0 0
    %1260 = vmatpush1.bf16.msra.mxu0 %v1254
    %1261 = vmatprep.subr.bf16.mxu0 0
    %1262 = vmatpush1.bf16.msra.mxu0 0
    %1263 = vmatprep.subr.bf16.mxu0 0
    %1264 = vmatpush1.bf16.msra.mxu0 0
    %1265 = vmatprep.subr.bf16.mxu0 0
    %1266 = vmatpush1.bf16.msra.mxu0 0
    %1267 = vmatprep.subr.bf16.mxu0 0
    %1268 = vmatpush1.bf16.msra.mxu0 0
    %1269 = vmatprep.subr.bf16.mxu0 0
    %1270 = vmatpush1.bf16.msra.mxu0 0
    %1271 = vmatprep.subr.bf16.mxu0 0
    %1272 = vmatpush1.bf16.msra.mxu0 0
    %1273 = vmatprep.subr.bf16.mxu0 0
    %1274 = vmatpush1.bf16.msra.mxu0 0
    %1275 = vmatprep.subr.bf16.mxu0 0
    %1276 = vmatpush1.bf16.msra.mxu0 0
    %1277 = vmatprep.subr.bf16.mxu0 0
    %1278 = vmatpush1.bf16.msra.mxu0 0
    %1279 = vmatprep.subr.bf16.mxu0 0
    %1280 = vmatpush1.bf16.msra.mxu0 0
    %1281 = vmatprep.subr.bf16.mxu0 0
    %1282 = vmatpush1.bf16.msra.mxu0 0
    %1283 = vmatprep.subr.bf16.mxu0 0
    %1284 = vmatpush1.bf16.msra.mxu0 0
    %1285 = vmatprep.subr.bf16.mxu0 0
    %1286 = vmatpush1.bf16.msra.mxu0 0
    %1287 = vmatprep.subr.bf16.mxu0 0
    %1288 = vmatpush1.bf16.msra.mxu0 0
    %1289 = vmatprep.mubr.bf16.mxu0 0
    %1290 = vmatmul.mubr.bf16.gmra.mrb[0].mxu0 %v1189
    %v1291 = vpop.f32.mrb[0].mxu0
    %v1292 = vadd.f32 %v1243, %v1291
    %v1293 = vpop.f32.mrb[0].mxu0
    %v1294 = vpop.f32.mrb[0].mxu0
    %v1295 = vadd.f32 %v1243, %v1294
    %v1296 = vpop.f32.mrb[0].mxu0
    %1297 = vdwg.mxu0
    %s1298 = scalar_lea.vmem %s10, 16
    %v1299 = vld [vmem:[%s1298] sm:$0xf]
    %v1300 = vld [vmem:[%s1298 + $0x4] sm:$0xf]
    %v1301 = vld [vmem:[%s1298 + $0x8] sm:$0xf]
    %v1302 = vld [vmem:[%s1298 + $0xc] sm:$0xf]
    %s1303 = scalar_lea.vmem %s11, 1
    %v1304 = vld [vmem:[%s1303] sm:$0x1]
    %v1306 = vlaneseq
    %v1307 = vshrl.u32 %v1306, 7
    %v1308 = vsub.s32 0, %v1307
    %v1309 = vrot.slane %v1304, %v1308
    %v1315 = vunpack.c.l.b16 %v1299
    %v1316 = vunpack.c.l.b16 %v1300
    %v1317 = vunpack.c.l.b16 %v1301
    %v1318 = vunpack.c.l.b16 %v1302
    %v1319 = vpack.c.b16 %v1316, %v1315
    %v1320 = vpack.c.b16 %v1318, %v1317
    %1323 = vmatprep.subr.bf16.mxu0 0
    %1324 = vmatpush1.bf16.msra.mxu0 %v1319
    %1325 = vmatprep.subr.bf16.mxu0 0
    %1326 = vmatpush1.bf16.msra.mxu0 %v1320
    %1327 = vmatprep.subr.bf16.mxu0 0
    %1328 = vmatpush1.bf16.msra.mxu0 0
    %1329 = vmatprep.subr.bf16.mxu0 0
    %1330 = vmatpush1.bf16.msra.mxu0 0
    %1331 = vmatprep.subr.bf16.mxu0 0
    %1332 = vmatpush1.bf16.msra.mxu0 0
    %1333 = vmatprep.subr.bf16.mxu0 0
    %1334 = vmatpush1.bf16.msra.mxu0 0
    %1335 = vmatprep.subr.bf16.mxu0 0
    %1336 = vmatpush1.bf16.msra.mxu0 0
    %1337 = vmatprep.subr.bf16.mxu0 0
    %1338 = vmatpush1.bf16.msra.mxu0 0
    %1339 = vmatprep.subr.bf16.mxu0 0
    %1340 = vmatpush1.bf16.msra.mxu0 0
    %1341 = vmatprep.subr.bf16.mxu0 0
    %1342 = vmatpush1.bf16.msra.mxu0 0
    %1343 = vmatprep.subr.bf16.mxu0 0
    %1344 = vmatpush1.bf16.msra.mxu0 0
    %1345 = vmatprep.subr.bf16.mxu0 0
    %1346 = vmatpush1.bf16.msra.mxu0 0
    %1347 = vmatprep.subr.bf16.mxu0 0
    %1348 = vmatpush1.bf16.msra.mxu0 0
    %1349 = vmatprep.subr.bf16.mxu0 0
    %1350 = vmatpush1.bf16.msra.mxu0 0
    %1351 = vmatprep.subr.bf16.mxu0 0
    %1352 = vmatpush1.bf16.msra.mxu0 0
    %1353 = vmatprep.subr.bf16.mxu0 0
    %1354 = vmatpush1.bf16.msra.mxu0 0
    %1355 = vmatprep.mubr.bf16.mxu0 0
    %1356 = vmatmul.mubr.bf16.gmra.mrb[0].mxu0 %v1189
    %v1357 = vpop.f32.mrb[0].mxu0
    %v1358 = vadd.f32 %v1309, %v1357
    %v1359 = vpop.f32.mrb[0].mxu0
    %v1360 = vpop.f32.mrb[0].mxu0
    %v1361 = vadd.f32 %v1309, %v1360
    %v1362 = vpop.f32.mrb[0].mxu0
    %1363 = vdwg.mxu0
    %v1364 = vmul.f32 %v1226, %v183
    %v1365 = vmul.f32 %v1226, %v184
    %v1366 = vmul.f32 %v1226, %v185
    %v1367 = vmul.f32 %v1226, %v186
    %v1368 = vmul.f32 %v1229, %v183
    %v1369 = vmul.f32 %v1229, %v184
    %v1370 = vmul.f32 %v1229, %v185
    %v1371 = vmul.f32 %v1229, %v186
    %v1372 = vpack.c.bf16 %v1365, %v1364
    %v1373 = vpack.c.bf16 %v1367, %v1366
    %v1374 = vpack.c.bf16 %v1369, %v1368
    %v1375 = vpack.c.bf16 %v1371, %v1370
    %v1376 = vpack.c.bf16 %v1292, %v1292
    %v1377 = vpack.c.bf16 %v1295, %v1295
    %v1379 = vsel %vm189, %v1372, 0
    %v1382 = vsel %vm189, %v1373, 0
    %v1385 = vsel %vm189, %v1376, 0
    %1387 = vmatprep.subr.bf16.mxu0 0
    %1388 = vmatpush1.bf16.xpose.msra.mxu0 %v1385
    %1389 = vmatprep.subr.bf16.mxu0 0
    %1390 = vmatpush1.bf16.xpose.msra.mxu0 0
    %1391 = vmatprep.subr.bf16.mxu0 0
    %1392 = vmatpush1.bf16.xpose.msra.mxu0 0
    %1393 = vmatprep.subr.bf16.mxu0 0
    %1394 = vmatpush1.bf16.xpose.msra.mxu0 0
    %1395 = vmatprep.subr.bf16.mxu0 0
    %1396 = vmatpush1.bf16.xpose.msra.mxu0 0
    %1397 = vmatprep.subr.bf16.mxu0 0
    %1398 = vmatpush1.bf16.xpose.msra.mxu0 0
    %1399 = vmatprep.subr.bf16.mxu0 0
    %1400 = vmatpush1.bf16.xpose.msra.mxu0 0
    %1401 = vmatprep.subr.bf16.mxu0 0
    %1402 = vmatpush1.bf16.xpose.msra.mxu0 0
    %1403 = vmatprep.subr.bf16.mxu0 0
    %1404 = vmatpush1.bf16.xpose.msra.mxu0 0
    %1405 = vmatprep.subr.bf16.mxu0 0
    %1406 = vmatpush1.bf16.xpose.msra.mxu0 0
    %1407 = vmatprep.subr.bf16.mxu0 0
    %1408 = vmatpush1.bf16.xpose.msra.mxu0 0
    %1409 = vmatprep.subr.bf16.mxu0 0
    %1410 = vmatpush1.bf16.xpose.msra.mxu0 0
    %1411 = vmatprep.subr.bf16.mxu0 0
    %1412 = vmatpush1.bf16.xpose.msra.mxu0 0
    %1413 = vmatprep.subr.bf16.mxu0 0
    %1414 = vmatpush1.bf16.xpose.msra.mxu0 0
    %1415 = vmatprep.subr.bf16.mxu0 0
    %1416 = vmatpush1.bf16.xpose.msra.mxu0 0
    %1417 = vmatprep.subr.bf16.mxu0 0
    %1418 = vmatpush1.bf16.xpose.msra.mxu0 0
    %1419 = vmatprep.mubr.bf16.mxu0 0
    %1420 = vmatmul.mubr.bf16.gmra.mrb[0].mxu0 %v1379
    %v1421 = vpop.f32.mrb[0].mxu0
    %v1422 = vadd.f32 0.0, %v1421
    %v1423 = vpop.f32.mrb[0].mxu0
    %v1424 = vpop.f32.mrb[0].mxu0
    %v1425 = vadd.f32 0.0, %v1424
    %v1426 = vpop.f32.mrb[0].mxu0
    %1427 = vmatprep.mubr.bf16.mxu0 0
    %1428 = vmatmul.mubr.bf16.gmra.mrb[0].mxu0 %v1382
    %v1429 = vpop.f32.mrb[0].mxu0
    %v1430 = vadd.f32 0.0, %v1429
    %v1431 = vpop.f32.mrb[0].mxu0
    %v1432 = vpop.f32.mrb[0].mxu0
    %v1433 = vadd.f32 0.0, %v1432
    %v1434 = vpop.f32.mrb[0].mxu0
    %1435 = vdwg.mxu0
    %v1437 = vsel %vm189, %v1374, 0
    %v1440 = vsel %vm189, %v1375, 0
    %v1443 = vsel %vm189, %v1377, 0
    %1445 = vmatprep.subr.bf16.mxu0 0
    %1446 = vmatpush1.bf16.xpose.msra.mxu0 %v1443
    %1447 = vmatprep.subr.bf16.mxu0 0
    %1448 = vmatpush1.bf16.xpose.msra.mxu0 0
    %1449 = vmatprep.subr.bf16.mxu0 0
    %1450 = vmatpush1.bf16.xpose.msra.mxu0 0
    %1451 = vmatprep.subr.bf16.mxu0 0
    %1452 = vmatpush1.bf16.xpose.msra.mxu0 0
    %1453 = vmatprep.subr.bf16.mxu0 0
    %1454 = vmatpush1.bf16.xpose.msra.mxu0 0
    %1455 = vmatprep.subr.bf16.mxu0 0
    %1456 = vmatpush1.bf16.xpose.msra.mxu0 0
    %1457 = vmatprep.subr.bf16.mxu0 0
    %1458 = vmatpush1.bf16.xpose.msra.mxu0 0
    %1459 = vmatprep.subr.bf16.mxu0 0
    %1460 = vmatpush1.bf16.xpose.msra.mxu0 0
    %1461 = vmatprep.subr.bf16.mxu0 0
    %1462 = vmatpush1.bf16.xpose.msra.mxu0 0
    %1463 = vmatprep.subr.bf16.mxu0 0
    %1464 = vmatpush1.bf16.xpose.msra.mxu0 0
    %1465 = vmatprep.subr.bf16.mxu0 0
    %1466 = vmatpush1.bf16.xpose.msra.mxu0 0
    %1467 = vmatprep.subr.bf16.mxu0 0
    %1468 = vmatpush1.bf16.xpose.msra.mxu0 0
    %1469 = vmatprep.subr.bf16.mxu0 0
    %1470 = vmatpush1.bf16.xpose.msra.mxu0 0
    %1471 = vmatprep.subr.bf16.mxu0 0
    %1472 = vmatpush1.bf16.xpose.msra.mxu0 0
    %1473 = vmatprep.subr.bf16.mxu0 0
    %1474 = vmatpush1.bf16.xpose.msra.mxu0 0
    %1475 = vmatprep.subr.bf16.mxu0 0
    %1476 = vmatpush1.bf16.xpose.msra.mxu0 0
    %1477 = vmatprep.mubr.bf16.mxu0 0
    %1478 = vmatmul.mubr.bf16.gmra.mrb[0].mxu0 %v1437
    %v1479 = vpop.f32.mrb[0].mxu0
    %v1480 = vadd.f32 0.0, %v1479
    %v1481 = vpop.f32.mrb[0].mxu0
    %v1482 = vpop.f32.mrb[0].mxu0
    %v1483 = vadd.f32 0.0, %v1482
    %v1484 = vpop.f32.mrb[0].mxu0
    %1485 = vmatprep.mubr.bf16.mxu0 0
    %1486 = vmatmul.mubr.bf16.gmra.mrb[0].mxu0 %v1440
    %v1487 = vpop.f32.mrb[0].mxu0
    %v1488 = vadd.f32 0.0, %v1487
    %v1489 = vpop.f32.mrb[0].mxu0
    %v1490 = vpop.f32.mrb[0].mxu0
    %v1491 = vadd.f32 0.0, %v1490
    %v1492 = vpop.f32.mrb[0].mxu0
    %1493 = vdwg.mxu0
    %v1494 = vmul.f32 %v1422, 0.35355338
    %v1495 = vmul.f32 %v1425, 0.35355338
    %v1496 = vmul.f32 %v1430, 0.35355338
    %v1497 = vmul.f32 %v1433, 0.35355338
    %v1498 = vmul.f32 %v1480, 0.35355338
    %v1499 = vmul.f32 %v1483, 0.35355338
    %v1500 = vmul.f32 %v1488, 0.35355338
    %v1501 = vmul.f32 %v1491, 0.35355338
    %v1502 = vsel %vm567, %v1494, -inf
    %1503 = vmax.xlane.f32.xlu0 %v1502
    %v1504 = vpop.xlane.xlu0 %1503
    %v1505 = vsel %vm567, %v1495, -inf
    %1506 = vmax.xlane.f32.xlu0 %v1505
    %v1507 = vpop.xlane.xlu0 %1506
    %v1508 = vsel %vm567, %v1496, -inf
    %1509 = vmax.xlane.f32.xlu0 %v1508
    %v1510 = vpop.xlane.xlu0 %1509
    %v1511 = vsel %vm567, %v1497, -inf
    %1512 = vmax.xlane.f32.xlu0 %v1511
    %v1513 = vpop.xlane.xlu0 %1512
    %v1514 = vsel %vm567, %v1498, -inf
    %1515 = vmax.xlane.f32.xlu0 %v1514
    %v1516 = vpop.xlane.xlu0 %1515
    %v1517 = vsel %vm567, %v1499, -inf
    %1518 = vmax.xlane.f32.xlu0 %v1517
    %v1519 = vpop.xlane.xlu0 %1518
    %v1520 = vsel %vm567, %v1500, -inf
    %1521 = vmax.xlane.f32.xlu0 %v1520
    %v1522 = vpop.xlane.xlu0 %1521
    %v1523 = vsel %vm567, %v1501, -inf
    %1524 = vmax.xlane.f32.xlu0 %v1523
    %v1525 = vpop.xlane.xlu0 %1524
    %v1526 = vsub.f32 %v1494, %v1504
    %v1527 = vsub.f32 %v1495, %v1507
    %v1528 = vsub.f32 %v1496, %v1510
    %v1529 = vsub.f32 %v1497, %v1513
    %v1530 = vsub.f32 %v1498, %v1516
    %v1531 = vsub.f32 %v1499, %v1519
    %v1532 = vsub.f32 %v1500, %v1522
    %v1533 = vsub.f32 %v1501, %v1525
    %v1534 = vmul.f32 %v1526, 1.442695
    %v1535 = vpow.pop %v1534
    %v1536 = vmul.f32 %v1527, 1.442695
    %v1537 = vpow.pop %v1536
    %v1538 = vmul.f32 %v1528, 1.442695
    %v1539 = vpow.pop %v1538
    %v1540 = vmul.f32 %v1529, 1.442695
    %v1541 = vpow.pop %v1540
    %v1542 = vmul.f32 %v1530, 1.442695
    %v1543 = vpow.pop %v1542
    %v1544 = vmul.f32 %v1531, 1.442695
    %v1545 = vpow.pop %v1544
    %v1546 = vmul.f32 %v1532, 1.442695
    %v1547 = vpow.pop %v1546
    %v1548 = vmul.f32 %v1533, 1.442695
    %v1549 = vpow.pop %v1548
    %v1550 = vsel %vm567, %v1535, 0.0
    %1551 = vadd.xlane.f32.xlu0 %v1550
    %v1552 = vpop.xlane.xlu0 %1551
    %v1553 = vsel %vm567, %v1537, 0.0
    %1554 = vadd.xlane.f32.xlu0 %v1553
    %v1555 = vpop.xlane.xlu0 %1554
    %v1556 = vsel %vm567, %v1539, 0.0
    %1557 = vadd.xlane.f32.xlu0 %v1556
    %v1558 = vpop.xlane.xlu0 %1557
    %v1559 = vsel %vm567, %v1541, 0.0
    %1560 = vadd.xlane.f32.xlu0 %v1559
    %v1561 = vpop.xlane.xlu0 %1560
    %v1562 = vsel %vm567, %v1543, 0.0
    %1563 = vadd.xlane.f32.xlu0 %v1562
    %v1564 = vpop.xlane.xlu0 %1563
    %v1565 = vsel %vm567, %v1545, 0.0
    %1566 = vadd.xlane.f32.xlu0 %v1565
    %v1567 = vpop.xlane.xlu0 %1566
    %v1568 = vsel %vm567, %v1547, 0.0
    %1569 = vadd.xlane.f32.xlu0 %v1568
    %v1570 = vpop.xlane.xlu0 %1569
    %v1571 = vsel %vm567, %v1549, 0.0
    %1572 = vadd.xlane.f32.xlu0 %v1571
    %v1573 = vpop.xlane.xlu0 %1572
    %v1574 = vrcp.pop %v1552
    %v1575 = vrcp.pop %v1555
    %v1576 = vrcp.pop %v1558
    %v1577 = vrcp.pop %v1561
    %v1578 = vrcp.pop %v1564
    %v1579 = vrcp.pop %v1567
    %v1580 = vrcp.pop %v1570
    %v1581 = vrcp.pop %v1573
    %v1582 = vmul.f32 %v1535, %v1574
    %v1583 = vmul.f32 %v1537, %v1575
    %v1584 = vmul.f32 %v1539, %v1576
    %v1585 = vmul.f32 %v1541, %v1577
    %v1586 = vmul.f32 %v1543, %v1578
    %v1587 = vmul.f32 %v1545, %v1579
    %v1588 = vmul.f32 %v1547, %v1580
    %v1589 = vmul.f32 %v1549, %v1581
    %s1590 = scalar_lea.vmem [#allocation4], 64
    %1591 = vst.msk [vmem:[%s1590] sm:$0xff] %vm567, %v1582
    %1592 = vst.msk [vmem:[%s1590 + $0x8] sm:$0xff] %vm567, %v1583
    %1593 = vst.msk [vmem:[%s1590 + $0x10] sm:$0xff] %vm567, %v1584
    %1594 = vst.msk [vmem:[%s1590 + $0x18] sm:$0xff] %vm567, %v1585
    %1595 = vst.msk [vmem:[%s1590 + $0x20] sm:$0xff] %vm567, %v1586
    %1596 = vst.msk [vmem:[%s1590 + $0x28] sm:$0xff] %vm567, %v1587
    %1597 = vst.msk [vmem:[%s1590 + $0x30] sm:$0xff] %vm567, %v1588
    %1598 = vst.msk [vmem:[%s1590 + $0x38] sm:$0xff] %vm567, %v1589
    %v1599 = vpack.c.bf16 %v1583, %v1582
    %v1600 = vpack.c.bf16 %v1585, %v1584
    %v1601 = vpack.c.bf16 %v1587, %v1586
    %v1602 = vpack.c.bf16 %v1589, %v1588
    %v1603 = vpack.c.bf16 %v1358, %v1358
    %v1604 = vpack.c.bf16 %v1361, %v1361
    %v1606 = vsel %vm567, %v1599, 0
    %v1609 = vsel %vm567, %v1600, 0
    %v1612 = vsel %vm676, %v1603, 0
    %1614 = vmatprep.subr.bf16.mxu0 0
    %1615 = vmatpush1.bf16.msra.mxu0 %v1612
    %1616 = vmatprep.subr.bf16.mxu0 0
    %1617 = vmatpush1.bf16.msra.mxu0 0
    %1618 = vmatprep.subr.bf16.mxu0 0
    %1619 = vmatpush1.bf16.msra.mxu0 0
    %1620 = vmatprep.subr.bf16.mxu0 0
    %1621 = vmatpush1.bf16.msra.mxu0 0
    %1622 = vmatprep.subr.bf16.mxu0 0
    %1623 = vmatpush1.bf16.msra.mxu0 0
    %1624 = vmatprep.subr.bf16.mxu0 0
    %1625 = vmatpush1.bf16.msra.mxu0 0
    %1626 = vmatprep.subr.bf16.mxu0 0
    %1627 = vmatpush1.bf16.msra.mxu0 0
    %1628 = vmatprep.subr.bf16.mxu0 0
    %1629 = vmatpush1.bf16.msra.mxu0 0
    %1630 = vmatprep.subr.bf16.mxu0 0
    %1631 = vmatpush1.bf16.msra.mxu0 0
    %1632 = vmatprep.subr.bf16.mxu0 0
    %1633 = vmatpush1.bf16.msra.mxu0 0
    %1634 = vmatprep.subr.bf16.mxu0 0
    %1635 = vmatpush1.bf16.msra.mxu0 0
    %1636 = vmatprep.subr.bf16.mxu0 0
    %1637 = vmatpush1.bf16.msra.mxu0 0
    %1638 = vmatprep.subr.bf16.mxu0 0
    %1639 = vmatpush1.bf16.msra.mxu0 0
    %1640 = vmatprep.subr.bf16.mxu0 0
    %1641 = vmatpush1.bf16.msra.mxu0 0
    %1642 = vmatprep.subr.bf16.mxu0 0
    %1643 = vmatpush1.bf16.msra.mxu0 0
    %1644 = vmatprep.subr.bf16.mxu0 0
    %1645 = vmatpush1.bf16.msra.mxu0 0
    %1646 = vmatprep.mubr.bf16.mxu0 0
    %1647 = vmatmul.mubr.bf16.gmra.mrb[0].mxu0 %v1606
    %v1648 = vpop.f32.mrb[0].mxu0
    %v1649 = vadd.f32 0.0, %v1648
    %v1650 = vpop.f32.mrb[0].mxu0
    %v1651 = vpop.f32.mrb[0].mxu0
    %v1652 = vadd.f32 0.0, %v1651
    %v1653 = vpop.f32.mrb[0].mxu0
    %1654 = vmatprep.mubr.bf16.mxu0 0
    %1655 = vmatmul.mubr.bf16.gmra.mrb[0].mxu0 %v1609
    %v1656 = vpop.f32.mrb[0].mxu0
    %v1657 = vadd.f32 0.0, %v1656
    %v1658 = vpop.f32.mrb[0].mxu0
    %v1659 = vpop.f32.mrb[0].mxu0
    %v1660 = vadd.f32 0.0, %v1659
    %v1661 = vpop.f32.mrb[0].mxu0
    %1662 = vdwg.mxu0
    %v1664 = vsel %vm567, %v1601, 0
    %v1667 = vsel %vm567, %v1602, 0
    %v1670 = vsel %vm676, %v1604, 0
    %1672 = vmatprep.subr.bf16.mxu0 0
    %1673 = vmatpush1.bf16.msra.mxu0 %v1670
    %1674 = vmatprep.subr.bf16.mxu0 0
    %1675 = vmatpush1.bf16.msra.mxu0 0
    %1676 = vmatprep.subr.bf16.mxu0 0
    %1677 = vmatpush1.bf16.msra.mxu0 0
    %1678 = vmatprep.subr.bf16.mxu0 0
    %1679 = vmatpush1.bf16.msra.mxu0 0
    %1680 = vmatprep.subr.bf16.mxu0 0
    %1681 = vmatpush1.bf16.msra.mxu0 0
    %1682 = vmatprep.subr.bf16.mxu0 0
    %1683 = vmatpush1.bf16.msra.mxu0 0
    %1684 = vmatprep.subr.bf16.mxu0 0
    %1685 = vmatpush1.bf16.msra.mxu0 0
    %1686 = vmatprep.subr.bf16.mxu0 0
    %1687 = vmatpush1.bf16.msra.mxu0 0
    %1688 = vmatprep.subr.bf16.mxu0 0
    %1689 = vmatpush1.bf16.msra.mxu0 0
    %1690 = vmatprep.subr.bf16.mxu0 0
    %1691 = vmatpush1.bf16.msra.mxu0 0
    %1692 = vmatprep.subr.bf16.mxu0 0
    %1693 = vmatpush1.bf16.msra.mxu0 0
    %1694 = vmatprep.subr.bf16.mxu0 0
    %1695 = vmatpush1.bf16.msra.mxu0 0
    %1696 = vmatprep.subr.bf16.mxu0 0
    %1697 = vmatpush1.bf16.msra.mxu0 0
    %1698 = vmatprep.subr.bf16.mxu0 0
    %1699 = vmatpush1.bf16.msra.mxu0 0
    %1700 = vmatprep.subr.bf16.mxu0 0
    %1701 = vmatpush1.bf16.msra.mxu0 0
    %1702 = vmatprep.subr.bf16.mxu0 0
    %1703 = vmatpush1.bf16.msra.mxu0 0
    %1704 = vmatprep.mubr.bf16.mxu0 0
    %1705 = vmatmul.mubr.bf16.gmra.mrb[0].mxu0 %v1664
    %v1706 = vpop.f32.mrb[0].mxu0
    %v1707 = vadd.f32 0.0, %v1706
    %v1708 = vpop.f32.mrb[0].mxu0
    %v1709 = vpop.f32.mrb[0].mxu0
    %v1710 = vadd.f32 0.0, %v1709
    %v1711 = vpop.f32.mrb[0].mxu0
    %1712 = vmatprep.mubr.bf16.mxu0 0
    %1713 = vmatmul.mubr.bf16.gmra.mrb[0].mxu0 %v1667
    %v1714 = vpop.f32.mrb[0].mxu0
    %v1715 = vadd.f32 0.0, %v1714
    %v1716 = vpop.f32.mrb[0].mxu0
    %v1717 = vpop.f32.mrb[0].mxu0
    %v1718 = vadd.f32 0.0, %v1717
    %v1719 = vpop.f32.mrb[0].mxu0
    %1720 = vdwg.mxu0
    %v1721 = vmul.f32 %v1649, %v183
    %v1722 = vmul.f32 %v1652, %v184
    %v1723 = vmul.f32 %v1657, %v185
    %v1724 = vmul.f32 %v1660, %v186
    %v1725 = vmul.f32 %v1707, %v183
    %v1726 = vmul.f32 %v1710, %v184
    %v1727 = vmul.f32 %v1715, %v185
    %v1728 = vmul.f32 %v1718, %v186
    %v1729 = vadd.f32 %v1721, %v1722
    %v1730 = vadd.f32 %v1725, %v1726
    %v1731 = vadd.f32 %v1729, %v1723
    %v1732 = vadd.f32 %v1730, %v1727
    %v1733 = vadd.f32 %v1731, %v1724
    %v1734 = vadd.f32 %v1732, %v1728
    %v1735 = vpack.c.bf16 %v1734, %v1733
    %s1736 = scalar_lea.vmem %s12, 16
    %v1737 = vld [vmem:[%s1736] sm:$0xf]
    %v1738 = vld [vmem:[%s1736 + $0x4] sm:$0xf]
    %v1739 = vld [vmem:[%s1736 + $0x8] sm:$0xf]
    %v1740 = vld [vmem:[%s1736 + $0xc] sm:$0xf]
    %s1741 = scalar_lea.vmem %s13, 1
    %v1742 = vld [vmem:[%s1741] sm:$0x1]
    %v1744 = vlaneseq
    %v1745 = vshrl.u32 %v1744, 7
    %v1746 = vsub.s32 0, %v1745
    %v1747 = vrot.slane %v1742, %v1746
    %v1753 = vunpack.c.l.b16 %v1737
    %v1754 = vunpack.c.l.b16 %v1738
    %v1755 = vunpack.c.l.b16 %v1739
    %v1756 = vunpack.c.l.b16 %v1740
    %v1757 = vpack.c.b16 %v1754, %v1753
    %v1758 = vpack.c.b16 %v1756, %v1755
    %v1762 = vsel %vm189, %v1735, 0
    %1764 = vmatprep.subr.bf16.mxu0 0
    %1765 = vmatpush1.bf16.msra.mxu0 %v1757
    %1766 = vmatprep.subr.bf16.mxu0 0
    %1767 = vmatpush1.bf16.msra.mxu0 %v1758
    %1768 = vmatprep.subr.bf16.mxu0 0
    %1769 = vmatpush1.bf16.msra.mxu0 0
    %1770 = vmatprep.subr.bf16.mxu0 0
    %1771 = vmatpush1.bf16.msra.mxu0 0
    %1772 = vmatprep.subr.bf16.mxu0 0
    %1773 = vmatpush1.bf16.msra.mxu0 0
    %1774 = vmatprep.subr.bf16.mxu0 0
    %1775 = vmatpush1.bf16.msra.mxu0 0
    %1776 = vmatprep.subr.bf16.mxu0 0
    %1777 = vmatpush1.bf16.msra.mxu0 0
    %1778 = vmatprep.subr.bf16.mxu0 0
    %1779 = vmatpush1.bf16.msra.mxu0 0
    %1780 = vmatprep.subr.bf16.mxu0 0
    %1781 = vmatpush1.bf16.msra.mxu0 0
    %1782 = vmatprep.subr.bf16.mxu0 0
    %1783 = vmatpush1.bf16.msra.mxu0 0
    %1784 = vmatprep.subr.bf16.mxu0 0
    %1785 = vmatpush1.bf16.msra.mxu0 0
    %1786 = vmatprep.subr.bf16.mxu0 0
    %1787 = vmatpush1.bf16.msra.mxu0 0
    %1788 = vmatprep.subr.bf16.mxu0 0
    %1789 = vmatpush1.bf16.msra.mxu0 0
    %1790 = vmatprep.subr.bf16.mxu0 0
    %1791 = vmatpush1.bf16.msra.mxu0 0
    %1792 = vmatprep.subr.bf16.mxu0 0
    %1793 = vmatpush1.bf16.msra.mxu0 0
    %1794 = vmatprep.subr.bf16.mxu0 0
    %1795 = vmatpush1.bf16.msra.mxu0 0
    %1796 = vmatprep.mubr.bf16.mxu0 0
    %1797 = vmatmul.mubr.bf16.gmra.mrb[0].mxu0 %v1762
    %v1798 = vpop.f32.mrb[0].mxu0
    %v1799 = vadd.f32 %v1747, %v1798
    %v1800 = vpop.f32.mrb[0].mxu0
    %v1801 = vpop.f32.mrb[0].mxu0
    %v1802 = vadd.f32 %v1747, %v1801
    %v1803 = vpop.f32.mrb[0].mxu0
    %1804 = vdwg.mxu0
    %v1805 = vadd.f32 %v1114, %v1799
    %v1806 = vadd.f32 %v1115, %v1802
    %s1807 = scalar_lea.vmem %s14, 1
    %v1808 = vld [vmem:[%s1807] sm:$0x1]
    %s1809 = scalar_lea.vmem %s15, 1
    %v1810 = vld [vmem:[%s1809] sm:$0x1]
    %v1811 = vsel %vm189, %v1805, 0.0
    %1812 = vadd.xlane.f32.xlu0 %v1811
    %v1813 = vpop.xlane.xlu0 %1812
    %v1814 = vsel %vm189, %v1806, 0.0
    %1815 = vadd.xlane.f32.xlu0 %v1814
    %v1816 = vpop.xlane.xlu0 %1815
    %v1817 = vmul.f32 %v1813, %v196
    %v1818 = vmul.f32 %v1816, %v196
    %v1819 = vsub.f32 %v1805, %v1817
    %v1820 = vsub.f32 %v1806, %v1818
    %v1821 = vmul.f32 %v1819, %v1819
    %v1822 = vmul.f32 %v1820, %v1820
    %v1823 = vsel %vm189, %v1821, 0.0
    %1824 = vadd.xlane.f32.xlu0 %v1823
    %v1825 = vpop.xlane.xlu0 %1824
    %v1826 = vsel %vm189, %v1822, 0.0
    %1827 = vadd.xlane.f32.xlu0 %v1826
    %v1828 = vpop.xlane.xlu0 %1827
    %v1829 = vmul.f32 %v1825, %v196
    %v1830 = vmul.f32 %v1828, %v196
    %v1831 = vadd.f32 %v1829, 1e-05
    %v1832 = vadd.f32 %v1830, 1e-05
    %v1833 = vrsqrt.pop %v1831
    %v1834 = vrsqrt.pop %v1832
    %v1835 = vmul.f32 %v1819, %v1833
    %v1836 = vmul.f32 %v1820, %v1834
    %v1838 = vlaneseq
    %v1839 = vshrl.u32 %v1838, 7
    %v1840 = vsub.s32 0, %v1839
    %v1841 = vrot.slane %v1808, %v1840
    %v1843 = vmul.f32 %v1835, %v1841
    %v1844 = vmul.f32 %v1836, %v1841
    %v1846 = vlaneseq
    %v1847 = vshrl.u32 %v1846, 7
    %v1848 = vsub.s32 0, %v1847
    %v1849 = vrot.slane %v1810, %v1848
    %v1851 = vadd.f32 %v1843, %v1849
    %v1852 = vadd.f32 %v1844, %v1849
    %v1853 = vpack.c.bf16 %v1852, %v1851
    %s1854 = scalar_lea.vmem %s16, 16
    %v1855 = vld [vmem:[%s1854] sm:$0xf]
    %v1856 = vld [vmem:[%s1854 + $0x4] sm:$0xf]
    %v1857 = vld [vmem:[%s1854 + $0x8] sm:$0xf]
    %v1858 = vld [vmem:[%s1854 + $0xc] sm:$0xf]
    %s1859 = scalar_lea.vmem %s17, 1
    %v1860 = vld [vmem:[%s1859] sm:$0x1]
    %v1862 = vlaneseq
    %v1863 = vshrl.u32 %v1862, 7
    %v1864 = vsub.s32 0, %v1863
    %v1865 = vrot.slane %v1860, %v1864
    %v1871 = vunpack.c.l.b16 %v1855
    %v1872 = vunpack.c.l.b16 %v1856
    %v1873 = vunpack.c.l.b16 %v1857
    %v1874 = vunpack.c.l.b16 %v1858
    %v1875 = vpack.c.b16 %v1872, %v1871
    %v1876 = vpack.c.b16 %v1874, %v1873
    %v1880 = vsel %vm189, %v1853, 0
    %1882 = vmatprep.subr.bf16.mxu0 0
    %1883 = vmatpush1.bf16.msra.mxu0 %v1875
    %1884 = vmatprep.subr.bf16.mxu0 0
    %1885 = vmatpush1.bf16.msra.mxu0 %v1876
    %1886 = vmatprep.subr.bf16.mxu0 0
    %1887 = vmatpush1.bf16.msra.mxu0 0
    %1888 = vmatprep.subr.bf16.mxu0 0
    %1889 = vmatpush1.bf16.msra.mxu0 0
    %1890 = vmatprep.subr.bf16.mxu0 0
    %1891 = vmatpush1.bf16.msra.mxu0 0
    %1892 = vmatprep.subr.bf16.mxu0 0
    %1893 = vmatpush1.bf16.msra.mxu0 0
    %1894 = vmatprep.subr.bf16.mxu0 0
    %1895 = vmatpush1.bf16.msra.mxu0 0
    %1896 = vmatprep.subr.bf16.mxu0 0
    %1897 = vmatpush1.bf16.msra.mxu0 0
    %1898 = vmatprep.subr.bf16.mxu0 0
    %1899 = vmatpush1.bf16.msra.mxu0 0
    %1900 = vmatprep.subr.bf16.mxu0 0
    %1901 = vmatpush1.bf16.msra.mxu0 0
    %1902 = vmatprep.subr.bf16.mxu0 0
    %1903 = vmatpush1.bf16.msra.mxu0 0
    %1904 = vmatprep.subr.bf16.mxu0 0
    %1905 = vmatpush1.bf16.msra.mxu0 0
    %1906 = vmatprep.subr.bf16.mxu0 0
    %1907 = vmatpush1.bf16.msra.mxu0 0
    %1908 = vmatprep.subr.bf16.mxu0 0
    %1909 = vmatpush1.bf16.msra.mxu0 0
    %1910 = vmatprep.subr.bf16.mxu0 0
    %1911 = vmatpush1.bf16.msra.mxu0 0
    %1912 = vmatprep.subr.bf16.mxu0 0
    %1913 = vmatpush1.bf16.msra.mxu0 0
    %1914 = vmatprep.mubr.bf16.mxu0 0
    %1915 = vmatmul.mubr.bf16.gmra.mrb[0].mxu0 %v1880
    %v1916 = vpop.f32.mrb[0].mxu0
    %v1917 = vadd.f32 %v1865, %v1916
    %v1918 = vpop.f32.mrb[0].mxu0
    %v1919 = vpop.f32.mrb[0].mxu0
    %v1920 = vadd.f32 %v1865, %v1919
    %v1921 = vpop.f32.mrb[0].mxu0
    %1922 = vdwg.mxu0
    %v1923 = vmul.f32 %v1917, %v1917
    %v1924 = vmul.f32 %v1920, %v1920
    %v1925 = vmul.f32 %v1917, %v1923
    %v1926 = vmul.f32 %v1920, %v1924
    %v1927 = vmul.f32 %v1925, 0.044715
    %v1928 = vmul.f32 %v1926, 0.044715
    %v1929 = vadd.f32 %v1917, %v1927
    %v1930 = vadd.f32 %v1920, %v1928
    %v1931 = vmul.f32 %v1929, 0.7978846
    %v1932 = vmul.f32 %v1930, 0.7978846
    %v1933 = vtanh.pop %v1931
    %v1934 = vtanh.pop %v1932
    %v1935 = vadd.f32 %v1933, 1.0
    %v1936 = vadd.f32 %v1934, 1.0
    %v1937 = vmul.f32 %v1935, 0.5
    %v1938 = vmul.f32 %v1936, 0.5
    %v1939 = vmul.f32 %v1917, %v1937
    %v1940 = vmul.f32 %v1920, %v1938
    %v1941 = vpack.c.bf16 %v1940, %v1939
    %s1942 = scalar_lea.vmem %s18, 64
    %v1943 = vld [vmem:[%s1942] sm:$0xf]
    %v1944 = vld [vmem:[%s1942 + $0x4] sm:$0xf]
    %v1945 = vld [vmem:[%s1942 + $0x8] sm:$0xf]
    %v1946 = vld [vmem:[%s1942 + $0xc] sm:$0xf]
    %v1947 = vld [vmem:[%s1942 + $0x10] sm:$0xf]
    %v1948 = vld [vmem:[%s1942 + $0x14] sm:$0xf]
    %v1949 = vld [vmem:[%s1942 + $0x18] sm:$0xf]
    %v1950 = vld [vmem:[%s1942 + $0x1c] sm:$0xf]
    %v1951 = vld [vmem:[%s1942 + $0x20] sm:$0xf]
    %v1952 = vld [vmem:[%s1942 + $0x24] sm:$0xf]
    %v1953 = vld [vmem:[%s1942 + $0x28] sm:$0xf]
    %v1954 = vld [vmem:[%s1942 + $0x2c] sm:$0xf]
    %v1955 = vld [vmem:[%s1942 + $0x30] sm:$0xf]
    %v1956 = vld [vmem:[%s1942 + $0x34] sm:$0xf]
    %v1957 = vld [vmem:[%s1942 + $0x38] sm:$0xf]
    %v1958 = vld [vmem:[%s1942 + $0x3c] sm:$0xf]
    %s1959 = scalar_lea.vmem %s19, 1
    %v1960 = vld [vmem:[%s1959] sm:$0x1]
    %v1962 = vlaneseq
    %v1963 = vshrl.u32 %v1962, 7
    %v1964 = vsub.s32 0, %v1963
    %v1965 = vrot.slane %v1960, %v1964
    %v1983 = vunpack.c.l.b16 %v1943
    %v1984 = vunpack.c.l.b16 %v1944
    %v1985 = vunpack.c.l.b16 %v1945
    %v1986 = vunpack.c.l.b16 %v1946
    %v1987 = vunpack.c.l.b16 %v1947
    %v1988 = vunpack.c.l.b16 %v1948
    %v1989 = vunpack.c.l.b16 %v1949
    %v1990 = vunpack.c.l.b16 %v1950
    %v1991 = vunpack.c.l.b16 %v1951
    %v1992 = vunpack.c.l.b16 %v1952
    %v1993 = vunpack.c.l.b16 %v1953
    %v1994 = vunpack.c.l.b16 %v1954
    %v1995 = vunpack.c.l.b16 %v1955
    %v1996 = vunpack.c.l.b16 %v1956
    %v1997 = vunpack.c.l.b16 %v1957
    %v1998 = vunpack.c.l.b16 %v1958
    %v1999 = vpack.c.b16 %v1984, %v1983
    %v2000 = vpack.c.b16 %v1986, %v1985
    %v2001 = vpack.c.b16 %v1988, %v1987
    %v2002 = vpack.c.b16 %v1990, %v1989
    %v2003 = vpack.c.b16 %v1992, %v1991
    %v2004 = vpack.c.b16 %v1994, %v1993
    %v2005 = vpack.c.b16 %v1996, %v1995
    %v2006 = vpack.c.b16 %v1998, %v1997
    %2015 = vmatprep.subr.bf16.mxu0 0
    %2016 = vmatpush1.bf16.msra.mxu0 %v1999
    %2017 = vmatprep.subr.bf16.mxu0 0
    %2018 = vmatpush1.bf16.msra.mxu0 %v2000
    %2019 = vmatprep.subr.bf16.mxu0 0
    %2020 = vmatpush1.bf16.msra.mxu0 %v2001
    %2021 = vmatprep.subr.bf16.mxu0 0
    %2022 = vmatpush1.bf16.msra.mxu0 %v2002
    %2023 = vmatprep.subr.bf16.mxu0 0
    %2024 = vmatpush1.bf16.msra.mxu0 %v2003
    %2025 = vmatprep.subr.bf16.mxu0 0
    %2026 = vmatpush1.bf16.msra.mxu0 %v2004
    %2027 = vmatprep.subr.bf16.mxu0 0
    %2028 = vmatpush1.bf16.msra.mxu0 %v2005
    %2029 = vmatprep.subr.bf16.mxu0 0
    %2030 = vmatpush1.bf16.msra.mxu0 %v2006
    %2031 = vmatprep.subr.bf16.mxu0 0
    %2032 = vmatpush1.bf16.msra.mxu0 0
    %2033 = vmatprep.subr.bf16.mxu0 0
    %2034 = vmatpush1.bf16.msra.mxu0 0
    %2035 = vmatprep.subr.bf16.mxu0 0
    %2036 = vmatpush1.bf16.msra.mxu0 0
    %2037 = vmatprep.subr.bf16.mxu0 0
    %2038 = vmatpush1.bf16.msra.mxu0 0
    %2039 = vmatprep.subr.bf16.mxu0 0
    %2040 = vmatpush1.bf16.msra.mxu0 0
    %2041 = vmatprep.subr.bf16.mxu0 0
    %2042 = vmatpush1.bf16.msra.mxu0 0
    %2043 = vmatprep.subr.bf16.mxu0 0
    %2044 = vmatpush1.bf16.msra.mxu0 0
    %2045 = vmatprep.subr.bf16.mxu0 0
    %2046 = vmatpush1.bf16.msra.mxu0 0
    %2047 = vmatprep.mubr.bf16.mxu0 0
    %2048 = vmatmul.mubr.bf16.gmra.mrb[0].mxu0 %v1941
    %v2049 = vpop.f32.mrb[0].mxu0
    %v2050 = vadd.f32 %v1965, %v2049
    %v2051 = vpop.f32.mrb[0].mxu0
    %v2052 = vpop.f32.mrb[0].mxu0
    %v2053 = vadd.f32 %v1965, %v2052
    %v2054 = vpop.f32.mrb[0].mxu0
    %2055 = vdwg.mxu0
    %v2056 = vadd.f32 %v1805, %v2050
    %v2057 = vadd.f32 %v1806, %v2053
    %v2058 = vld [vmem:[%s20] sm:$0x1]
    %v2059 = vld [vmem:[%s21] sm:$0x1]
    %v2060 = vsel %vm189, %v2056, 0.0
    %2061 = vadd.xlane.f32.xlu0 %v2060
    %v2062 = vpop.xlane.xlu0 %2061
    %v2063 = vsel %vm189, %v2057, 0.0
    %2064 = vadd.xlane.f32.xlu0 %v2063
    %v2065 = vpop.xlane.xlu0 %2064
    %v2066 = vmul.f32 %v2062, %v196
    %v2067 = vmul.f32 %v2065, %v196
    %v2068 = vsub.f32 %v2056, %v2066
    %v2069 = vsub.f32 %v2057, %v2067
    %v2070 = vmul.f32 %v2068, %v2068
    %v2071 = vmul.f32 %v2069, %v2069
    %v2072 = vsel %vm189, %v2070, 0.0
    %2073 = vadd.xlane.f32.xlu0 %v2072
    %v2074 = vpop.xlane.xlu0 %2073
    %v2075 = vsel %vm189, %v2071, 0.0
    %2076 = vadd.xlane.f32.xlu0 %v2075
    %v2077 = vpop.xlane.xlu0 %2076
    %v2078 = vmul.f32 %v2074, %v196
    %v2079 = vmul.f32 %v2077, %v196
    %v2080 = vadd.f32 %v2078, 1e-05
    %v2081 = vadd.f32 %v2079, 1e-05
    %v2082 = vrsqrt.pop %v2080
    %v2083 = vrsqrt.pop %v2081
    %v2084 = vmul.f32 %v2068, %v2082
    %v2085 = vmul.f32 %v2069, %v2083
    %v2087 = vlaneseq
    %v2088 = vshrl.u32 %v2087, 7
    %v2089 = vsub.s32 0, %v2088
    %v2090 = vrot.slane %v2058, %v2089
    %v2092 = vmul.f32 %v2084, %v2090
    %v2093 = vmul.f32 %v2085, %v2090
    %v2095 = vlaneseq
    %v2096 = vshrl.u32 %v2095, 7
    %v2097 = vsub.s32 0, %v2096
    %v2098 = vrot.slane %v2059, %v2097
    %v2100 = vadd.f32 %v2092, %v2098
    %v2101 = vadd.f32 %v2093, %v2098
    %2102 = vst.msk [vmem:[#allocation2] sm:$0xff] %vm189, %v2100
    %2103 = vst.msk [vmem:[#allocation2 + $0x8] sm:$0xff] %vm189, %v2101
    // Predicated region
    $region90: #{encoder_forward.1} parent=1 // pred_check
      _
    $region91: #{encoder_forward.1} parent=1 // pred_check_branch
      %2105 = sbr.rel (0) target = $region93
    $region92: #{encoder_forward.1} parent=1 // pred_region
      %s2107 = ssub.s32 256, 256
      %2108 = vsyncadd [#allocation3], %s2107
      %s2109 = sshll.u32 [#allocation2], 4
      %s2110 = int_to_ptr.vmem [resolvable:$true] %s2109
      %2115 = dma.vmem_to_hbm [thread:$0]  %s2110, 256, %s22, [#allocation3], 128, 128, 8
    $region93: #{encoder_forward.1} parent=1 // pred_fallthru
      _
    // Predicated region
    $region94: #{encoder_forward.1} parent=1 // pred_check
      _
    $region95: #{encoder_forward.1} parent=1 // pred_check_branch
      %2117 = sbr.rel (0) target = $region97
    $region96: #{encoder_forward.1} parent=1 // pred_region
      %s2119 = ssub.s32 2048, 2048
      %2120 = vsyncadd [#allocation5], %s2119
      %s2121 = sshll.u32 [#allocation4], 4
      %s2122 = int_to_ptr.vmem [resolvable:$true] %s2121
      %2127 = dma.vmem_to_hbm [thread:$0]  %s2122, 2048, %s23, [#allocation5], 128, 128, 8
    $region97: #{encoder_forward.1} parent=1 // pred_fallthru
      _
    // Predicated region
    $region98: #{encoder_forward.1} parent=1 // pred_check
      _
    $region99: #{encoder_forward.1} parent=1 // pred_check_branch
      %2129 = sbr.rel (0) target = $region101
    $region100: #{encoder_forward.1} parent=1 // pred_region
      %2130 = dma.done [#allocation3], 256
    $region101: #{encoder_forward.1} parent=1 // pred_fallthru
      _
    // Predicated region
    $region102: #{encoder_forward.1} parent=1 // pred_check
      _
    $region103: #{encoder_forward.1} parent=1 // pred_check_branch
      %2132 = sbr.rel (0) target = $region105
    $region104: #{encoder_forward.1} parent=1 // pred_region
      %2133 = dma.done [#allocation5], 2048
    $region105: #{encoder_forward.1} parent=1 // pred_fallthru
      _
    %2134 = vsyncpa [#allocation3], 1
    %2135 = vsyncpa [#allocation5], 1

</llo_original>
